<compile_context>
chip_gen: v7x
topology: tpu7x:2x2x1
jax: 0.10.0
libtpu: 0.0.40
codegen_flags: <defaults>
</compile_context>

<pallas_src>
import functools

import numpy as np
import jax
import jax.numpy as jnp
from jax.experimental import pallas as pl
from jax.experimental.pallas import tpu as pltpu

_TILE_M = 256          # lane-tile for the M = N*H*W dimension (multiple of 128)
_LANE = 128
_VMEM_LIMIT = 32 * 1024 * 1024   # tiles here need << 1 MiB; explicit for clarity


# ---------------------------------------------------------------------------
# Pallas kernels
# ---------------------------------------------------------------------------

def fused_matmul_kernel(x_ref, w_ref, b_ref, o_ref, *, apply_relu):
    """out[Cout, Mt] = act(W[Cout, K] @ X[K, Mt] + b)  (conv + folded BN + ReLU)."""
    acc = jnp.dot(w_ref[...], x_ref[...], preferred_element_type=jnp.float32)
    y = acc + b_ref[...]
    if apply_relu:
        y = jnp.maximum(y, 0.0)
    o_ref[...] = y.astype(o_ref.dtype)


def seb_fused_kernel(hp_ref, w3_ref, b3_ref, lo_ref, w1_ref, b1_ref, *rest,
                     with_head):
    """Fused SematicEmbbedBlock (+ optional heatmap 1x1 epilogue).

    hp_ref : (9*Chigh, Mt)  bilinearly pre-upsampled 3x3 patch planes (bf16)
    lo_ref : (Clow,    Mt)  low-resolution-path feature map (bf16)
    out    : (Cout, Mt)  = (W3 @ hp + b3) * (W1 @ lo + b1)          [no head]
             (Ncls, Mt)  = Wh @ out + bh                            [with head]
    """
    if with_head:
        wh_ref, bh_ref, o_ref = rest
    else:
        (o_ref,) = rest
    hi = jnp.dot(w3_ref[...], hp_ref[...],
                 preferred_element_type=jnp.float32) + b3_ref[...]
    lo = jnp.dot(w1_ref[...], lo_ref[...],
                 preferred_element_type=jnp.float32) + b1_ref[...]
    prod = hi * lo
    if with_head:
        heat = jnp.dot(wh_ref[...].astype(jnp.float32), prod,
                       preferred_element_type=jnp.float32) + bh_ref[...]
        o_ref[...] = heat.astype(o_ref.dtype)
    else:
        o_ref[...] = prod.astype(o_ref.dtype)


# ---------------------------------------------------------------------------
# JAX glue (data movement / layout only)
# ---------------------------------------------------------------------------

def _pad_lanes(x2d, mult=_LANE):
    m = x2d.shape[-1]
    pad = (-m) % mult
    if pad:
        x2d = jnp.pad(x2d, ((0, 0), (0, pad)))
    return x2d


def _tile_m(mp):
    for t in (_TILE_M, _LANE):
        if mp % t == 0:
            return t
    return mp


def _shifted_planes(x, k, pad):
    """x: (C, N, H, W) -> (k*k*C, N, H, W) shifted patch planes, (ky,kx,c) order."""
    c, n, h, w = x.shape
    xp = jnp.pad(x, ((0, 0), (0, 0), (pad, pad), (pad, pad)))
    planes = [xp[:, :, dy:dy + h, dx:dx + w]
              for dy in range(k) for dx in range(k)]
    return jnp.concatenate(planes, axis=0)


def maxpool2x2(x):
    """2x2 max pool on (C, N, H, W).  NOTE: assumes even H, W (PyTorch truncates)."""
    return jnp.maximum(
        jnp.maximum(x[:, :, 0::2, 0::2], x[:, :, 0::2, 1::2]),
        jnp.maximum(x[:, :, 1::2, 0::2], x[:, :, 1::2, 1::2]))


@functools.lru_cache(maxsize=None)
def _interp_matrix_np(n_out, n_in):
    """1-D bilinear interpolation matrix, align_corners=True (built once per size)."""
    u = np.zeros((n_out, n_in), dtype=np.float32)
    if n_out == 1 or n_in == 1:
        u[:, 0] = 1.0
        return u
    src = np.arange(n_out) * (n_in - 1) / (n_out - 1)
    lo = np.clip(np.floor(src).astype(np.int64), 0, n_in - 1)
    hi = np.minimum(lo + 1, n_in - 1)
    wf = (src - lo).astype(np.float32)
    for i in range(n_out):
        u[i, lo[i]] += 1.0 - wf[i]
        u[i, hi[i]] += wf[i]
    return u


def _upsample2x(x):
    """Separable align_corners=True bilinear x2 upsample on (K, N, H, W)."""
    _, _, h, w = x.shape
    uh = jnp.asarray(_interp_matrix_np(2 * h, h))
    uw = jnp.asarray(_interp_matrix_np(2 * w, w))
    y = jnp.einsum('Yh,knhw->knYw', uh, x)
    return jnp.einsum('Xw,knhw->knhX', uw, y)


def _mosaic_params():
    return pltpu.CompilerParams(dimension_semantics=("parallel",),
                                vmem_limit_bytes=_VMEM_LIMIT)


# ---------------------------------------------------------------------------
# Layer wrappers
# ---------------------------------------------------------------------------

def conv3x3_bn_act(x, w_mat, bias, *, apply_relu):
    """3x3 conv (stride 1, pad 1) + folded BN bias (+ ReLU), lane-dense matmul."""
    _, n, h, w = x.shape
    cout, k2c = w_mat.shape
    m = n * h * w
    patches = _shifted_planes(x, 3, 1).reshape(k2c, m)
    patches = _pad_lanes(patches.astype(jnp.bfloat16))
    mp = patches.shape[-1]
    tm = _tile_m(mp)
    out = pl.pallas_call(
        functools.partial(fused_matmul_kernel, apply_relu=apply_relu),
        grid=(mp // tm,),
        in_specs=[
            pl.BlockSpec((k2c, tm), lambda i: (0, i)),
            pl.BlockSpec((cout, k2c), lambda i: (0, 0)),   # resident weights
            pl.BlockSpec((cout, 1), lambda i: (0, 0)),     # resident bias
        ],
        out_specs=pl.BlockSpec((cout, tm), lambda i: (0, i)),
        out_shape=jax.ShapeDtypeStruct((cout, mp), jnp.bfloat16),
        compiler_params=_mosaic_params(),
    )(patches, w_mat, bias)
    return out[:, :m].reshape(cout, n, h, w)


def seb_block(high, low, w3_mat, b3, w1_mat, b1, head=None):
    """SematicEmbbedBlock: upsample(conv3x3(high)) * conv1x1(low) [+ heatmap]."""
    ch, n, _, _ = high.shape
    cl, _, hl, wl = low.shape
    cout, k2c = w3_mat.shape
    m = n * hl * wl

    # up(conv3x3(high)) == W3 @ up(patch planes) + b3  (bilinear upsample is linear)
    up_planes = _upsample2x(_shifted_planes(high, 3, 1))      # (9*Chigh, N, Hl, Wl)
    hp = _pad_lanes(up_planes.reshape(k2c, m).astype(jnp.bfloat16))
    lo = _pad_lanes(low.reshape(cl, m).astype(jnp.bfloat16))
    mp = hp.shape[-1]
    tm = _tile_m(mp)

    in_specs = [
        pl.BlockSpec((k2c, tm), lambda i: (0, i)),
        pl.BlockSpec((cout, k2c), lambda i: (0, 0)),
        pl.BlockSpec((cout, 1), lambda i: (0, 0)),
        pl.BlockSpec((cl, tm), lambda i: (0, i)),
        pl.BlockSpec((cout, cl), lambda i: (0, 0)),
        pl.BlockSpec((cout, 1), lambda i: (0, 0)),
    ]
    args = [hp, w3_mat, b3, lo, w1_mat, b1]
    if head is None:
        out_c, out_dtype = cout, jnp.bfloat16
        kernel = functools.partial(seb_fused_kernel, with_head=False)
    else:
        wh_mat, bh = head
        out_c, out_dtype = wh_mat.shape[0], jnp.float32
        in_specs += [pl.BlockSpec((out_c, cout), lambda i: (0, 0)),
                     pl.BlockSpec((out_c, 1), lambda i: (0, 0))]
        args += [wh_mat, bh]
        kernel = functools.partial(seb_fused_kernel, with_head=True)

    out = pl.pallas_call(
        kernel,
        grid=(mp // tm,),
        in_specs=in_specs,
        out_specs=pl.BlockSpec((out_c, tm), lambda i: (0, i)),
        out_shape=jax.ShapeDtypeStruct((out_c, mp), out_dtype),
        compiler_params=_mosaic_params(),
    )(*args)
    return out[:, :m].reshape(out_c, n, hl, wl)


# ---------------------------------------------------------------------------
# Parameters (PyTorch layout) and inference-time folding
# ---------------------------------------------------------------------------

def init_params(key, num_classes=1, in_channels=3):
    params = {}
    ks = iter(jax.random.split(key, 64))

    def conv_p(cin, cout, k):
        w = jax.random.normal(next(ks), (cout, cin, k, k), jnp.float32) * 0.1
        b = jax.random.normal(next(ks), (cout,), jnp.float32) * 0.05
        return w, b

    def bn_p(c):
        gamma = 1.0 + 0.1 * jax.random.normal(next(ks), (c,), jnp.float32)
        beta = 0.05 * jax.random.normal(next(ks), (c,), jnp.float32)
        mean = 0.05 * jax.random.normal(next(ks), (c,), jnp.float32)
        var = 0.5 + jnp.abs(jax.random.normal(next(ks), (c,), jnp.float32))
        return gamma, beta, mean, var

    chans = [(in_channels, 6), (6, 12), (12, 20), (20, 40)]
    for i, (ci, co) in enumerate(chans, start=1):
        params[f"conv{i}"] = conv_p(ci, co, 3)
        params[f"bn{i}"] = bn_p(co)

    for i, (hi_c, lo_c, out_c) in enumerate(
            [(40, 20, 20), (20, 12, 12), (12, 6, 6)], start=1):
        params[f"seb{i}_3x3"] = conv_p(hi_c, out_c, 3)
        params[f"seb{i}_1x1"] = conv_p(lo_c, out_c, 1)

    params["heatmap"] = conv_p(6, num_classes, 1)
    return params


def _fold_bn_into_w(w, b, gamma, beta, mean, var, eps=1e-5):
    """Conv (Cout,Cin,kh,kw) + eval-mode BN -> bf16 weight matrix + f32 bias."""
    scale = gamma / jnp.sqrt(var + eps)
    cout = w.shape[0]
    w_mat = (w * scale[:, None, None, None]).transpose(0, 2, 3, 1)
    w_mat = w_mat.reshape(cout, -1).astype(jnp.bfloat16)        # K = (ky,kx,cin)
    bias = (scale * (b - mean) + beta).reshape(cout, 1).astype(jnp.float32)
    return w_mat, bias


def _as_mat(w, b):
    cout = w.shape[0]
    w_mat = w.transpose(0, 2, 3, 1).reshape(cout, -1).astype(jnp.bfloat16)
    return w_mat, b.reshape(cout, 1).astype(jnp.float32)


# ---------------------------------------------------------------------------
# GxyNet forward
# ---------------------------------------------------------------------------

def gxynet_forward(x_nchw, params):
    # NCHW -> internal channels-leading (C, N, H, W), bf16 activations.
    x = jnp.transpose(x_nchw, (1, 0, 2, 3)).astype(jnp.bfloat16)

    def stage(inp, conv_name, bn_name):
        w, b = params[conv_name]
        w_mat, bias = _fold_bn_into_w(w, b, *params[bn_name])
        return conv3x3_bn_act(inp, w_mat, bias, apply_relu=True)

    x1 = stage(x, "conv1", "bn1")
    m1 = maxpool2x2(x1)
    x2 = stage(m1, "conv2", "bn2")
    m2 = maxpool2x2(x2)
    x3 = stage(m2, "conv3", "bn3")
    m3 = maxpool2x2(x3)
    x4 = stage(m3, "conv4", "bn4")

    s1w3, s1b3 = _as_mat(*params["seb1_3x3"]); s1w1, s1b1 = _as_mat(*params["seb1_1x1"])
    s2w3, s2b3 = _as_mat(*params["seb2_3x3"]); s2w1, s2b1 = _as_mat(*params["seb2_1x1"])
    s3w3, s3b3 = _as_mat(*params["seb3_3x3"]); s3w1, s3b1 = _as_mat(*params["seb3_1x1"])
    hwm, hbm = _as_mat(*params["heatmap"])

    up1 = seb_block(x4, x3, s1w3, s1b3, s1w1, s1b1)
    up2 = seb_block(up1, x2, s2w3, s2b3, s2w1, s2b1)
    # Last SEB fuses the heatmap 1x1 conv into its epilogue.
    out = seb_block(up2, x1, s3w3, s3b3, s3w1, s3b1, head=(hwm, hbm))

    # (num_classes, N, H, W) -> NCHW to match the PyTorch module.
    return jnp.transpose(out, (1, 0, 2, 3)).astype(jnp.float32)


# ---------------------------------------------------------------------------
# Main
# ---------------------------------------------------------------------------

if __name__ == "__main__":
    key = jax.random.PRNGKey(0)
    k_params, k_x = jax.random.split(key)

    batch, in_channels, spatial, num_classes = 2, 3, 16, 1
    params = init_params(k_params, num_classes=num_classes, in_channels=in_channels)
    x = jax.random.normal(k_x, (batch, in_channels, spatial, spatial), jnp.float32)

    fwd = jax.jit(lambda inp: gxynet_forward(inp, params))
    out = fwd(x)
    jax.block_until_ready(out)

    assert out.shape == (batch, num_classes, spatial, spatial), out.shape
    assert jnp.all(jnp.isfinite(out))
    print("KERNEL_OK")
</pallas_src>

<mosaic_0001>
module attributes {stable_mosaic.version = 11 : i64} {
  func.func @fused_matmul_kernel(%arg0: i32, %arg1: memref<27x256xbf16, #tpu.memory_space<vmem>>, %arg2: memref<6x27xbf16, #tpu.memory_space<vmem>>, %arg3: memref<6x1xf32, #tpu.memory_space<vmem>>, %arg4: memref<6x256xbf16, #tpu.memory_space<vmem>>) attributes {dimension_semantics = [#tpu.dimension_semantics<parallel>], iteration_bounds = array<i64: 2>, scalar_prefetch = 0 : i64, scratch_operands = 0 : i64, tpu.core_type = #tpu.core_type<tc>, window_params = [{transform_indices = @transform_0, window_bounds = array<i64: 27, 256>}, {pipeline_mode = #tpu.pipeline_mode<synchronous>, transform_indices = @transform_1, window_bounds = array<i64: 6, 27>}, {pipeline_mode = #tpu.pipeline_mode<synchronous>, transform_indices = @transform_2, window_bounds = array<i64: 6, 1>}, {transform_indices = @transform_3, window_bounds = array<i64: 6, 256>}]} {
    %c0 = arith.constant 0 : index
    %c0_0 = arith.constant 0 : index
    %0 = vector.load %arg2[%c0, %c0_0] : memref<6x27xbf16, #tpu.memory_space<vmem>>, vector<6x27xbf16>
    %c0_1 = arith.constant 0 : index
    %c0_2 = arith.constant 0 : index
    %1 = vector.load %arg1[%c0_1, %c0_2] : memref<27x256xbf16, #tpu.memory_space<vmem>>, vector<27x256xbf16>
    %cst = arith.constant dense<0.000000e+00> : vector<6x256xf32>
    %2 = tpu.matmul %0, %1, %cst {dimension_numbers = #tpu.dot_dimension_numbers<[1], [0], [0], [1], [0, 0, 1, 1], [], []>} : vector<6x27xbf16>, vector<27x256xbf16>, vector<6x256xf32> -> vector<6x256xf32>
    %c0_3 = arith.constant 0 : index
    %c0_4 = arith.constant 0 : index
    %3 = vector.load %arg3[%c0_3, %c0_4] : memref<6x1xf32, #tpu.memory_space<vmem>>, vector<6x1xf32>
    %4 = vector.broadcast %3 : vector<6x1xf32> to vector<6x256xf32>
    %5 = arith.addf %2, %4 : vector<6x256xf32>
    %cst_5 = arith.constant 0.000000e+00 : f32
    %6 = vector.broadcast %cst_5 : f32 to vector<6x256xf32>
    %7 = arith.maximumf %5, %6 : vector<6x256xf32>
    %8 = arith.truncf %7 : vector<6x256xf32> to vector<6x256xbf16>
    %c0_6 = arith.constant 0 : index
    %c0_7 = arith.constant 0 : index
    %9 = vector.load %arg4[%c0_6, %c0_7] : memref<6x256xbf16, #tpu.memory_space<vmem>>, vector<6x256xbf16>
    tpu.vector_store %arg4[%c0_6, %c0_7], %8 {strides = array<i32>} : memref<6x256xbf16, #tpu.memory_space<vmem>>, vector<6x256xbf16>,
    return
  }
  func.func @transform_0(%arg0: i32) -> (i32, i32) {
    %c0_i32 = arith.constant 0 : i32
    %c0_i32_0 = arith.constant 0 : i32
    return %c0_i32, %arg0 : i32, i32
  }
  func.func @transform_1(%arg0: i32) -> (i32, i32) {
    %c0_i32 = arith.constant 0 : i32
    %c0_i32_0 = arith.constant 0 : i32
    %c0_i32_1 = arith.constant 0 : i32
    return %c0_i32, %c0_i32_0 : i32, i32
  }
  func.func @transform_2(%arg0: i32) -> (i32, i32) {
    %c0_i32 = arith.constant 0 : i32
    %c0_i32_0 = arith.constant 0 : i32
    %c0_i32_1 = arith.constant 0 : i32
    return %c0_i32, %c0_i32_0 : i32, i32
  }
  func.func @transform_3(%arg0: i32) -> (i32, i32) {
    %c0_i32 = arith.constant 0 : i32
    %c0_i32_0 = arith.constant 0 : i32
    return %c0_i32, %arg0 : i32, i32
  }
}

module attributes {stable_mosaic.version = 11 : i64} {
  func.func @fused_matmul_kernel(%arg0: i32, %arg1: memref<54x128xbf16, #tpu.memory_space<vmem>>, %arg2: memref<12x54xbf16, #tpu.memory_space<vmem>>, %arg3: memref<12x1xf32, #tpu.memory_space<vmem>>, %arg4: memref<12x128xbf16, #tpu.memory_space<vmem>>) attributes {dimension_semantics = [#tpu.dimension_semantics<parallel>], iteration_bounds = array<i64: 1>, scalar_prefetch = 0 : i64, scratch_operands = 0 : i64, tpu.core_type = #tpu.core_type<tc>, window_params = [{transform_indices = @transform_0, window_bounds = array<i64: 54, 128>}, {pipeline_mode = #tpu.pipeline_mode<synchronous>, transform_indices = @transform_1, window_bounds = array<i64: 12, 54>}, {pipeline_mode = #tpu.pipeline_mode<synchronous>, transform_indices = @transform_2, window_bounds = array<i64: 12, 1>}, {transform_indices = @transform_3, window_bounds = array<i64: 12, 128>}]} {
    %c0 = arith.constant 0 : index
    %c0_0 = arith.constant 0 : index
    %0 = vector.load %arg2[%c0, %c0_0] : memref<12x54xbf16, #tpu.memory_space<vmem>>, vector<12x54xbf16>
    %c0_1 = arith.constant 0 : index
    %c0_2 = arith.constant 0 : index
    %1 = vector.load %arg1[%c0_1, %c0_2] : memref<54x128xbf16, #tpu.memory_space<vmem>>, vector<54x128xbf16>
    %cst = arith.constant dense<0.000000e+00> : vector<12x128xf32>
    %2 = tpu.matmul %0, %1, %cst {dimension_numbers = #tpu.dot_dimension_numbers<[1], [0], [0], [1], [0, 0, 1, 1], [], []>} : vector<12x54xbf16>, vector<54x128xbf16>, vector<12x128xf32> -> vector<12x128xf32>
    %c0_3 = arith.constant 0 : index
    %c0_4 = arith.constant 0 : index
    %3 = vector.load %arg3[%c0_3, %c0_4] : memref<12x1xf32, #tpu.memory_space<vmem>>, vector<12x1xf32>
    %4 = vector.broadcast %3 : vector<12x1xf32> to vector<12x128xf32>
    %5 = arith.addf %2, %4 : vector<12x128xf32>
    %cst_5 = arith.constant 0.000000e+00 : f32
    %6 = vector.broadcast %cst_5 : f32 to vector<12x128xf32>
    %7 = arith.maximumf %5, %6 : vector<12x128xf32>
    %8 = arith.truncf %7 : vector<12x128xf32> to vector<12x128xbf16>
    %c0_6 = arith.constant 0 : index
    %c0_7 = arith.constant 0 : index
    %9 = vector.load %arg4[%c0_6, %c0_7] : memref<12x128xbf16, #tpu.memory_space<vmem>>, vector<12x128xbf16>
    tpu.vector_store %arg4[%c0_6, %c0_7], %8 {strides = array<i32>} : memref<12x128xbf16, #tpu.memory_space<vmem>>, vector<12x128xbf16>,
    return
  }
  func.func @transform_0(%arg0: i32) -> (i32, i32) {
    %c0_i32 = arith.constant 0 : i32
    %c0_i32_0 = arith.constant 0 : i32
    return %c0_i32, %arg0 : i32, i32
  }
  func.func @transform_1(%arg0: i32) -> (i32, i32) {
    %c0_i32 = arith.constant 0 : i32
    %c0_i32_0 = arith.constant 0 : i32
    %c0_i32_1 = arith.constant 0 : i32
    return %c0_i32, %c0_i32_0 : i32, i32
  }
  func.func @transform_2(%arg0: i32) -> (i32, i32) {
    %c0_i32 = arith.constant 0 : i32
    %c0_i32_0 = arith.constant 0 : i32
    %c0_i32_1 = arith.constant 0 : i32
    return %c0_i32, %c0_i32_0 : i32, i32
  }
  func.func @transform_3(%arg0: i32) -> (i32, i32) {
    %c0_i32 = arith.constant 0 : i32
    %c0_i32_0 = arith.constant 0 : i32
    return %c0_i32, %arg0 : i32, i32
  }
}

module attributes {stable_mosaic.version = 11 : i64} {
  func.func @fused_matmul_kernel(%arg0: i32, %arg1: memref<108x128xbf16, #tpu.memory_space<vmem>>, %arg2: memref<20x108xbf16, #tpu.memory_space<vmem>>, %arg3: memref<20x1xf32, #tpu.memory_space<vmem>>, %arg4: memref<20x128xbf16, #tpu.memory_space<vmem>>) attributes {dimension_semantics = [#tpu.dimension_semantics<parallel>], iteration_bounds = array<i64: 1>, scalar_prefetch = 0 : i64, scratch_operands = 0 : i64, tpu.core_type = #tpu.core_type<tc>, window_params = [{transform_indices = @transform_0, window_bounds = array<i64: 108, 128>}, {pipeline_mode = #tpu.pipeline_mode<synchronous>, transform_indices = @transform_1, window_bounds = array<i64: 20, 108>}, {pipeline_mode = #tpu.pipeline_mode<synchronous>, transform_indices = @transform_2, window_bounds = array<i64: 20, 1>}, {transform_indices = @transform_3, window_bounds = array<i64: 20, 128>}]} {
    %c0 = arith.constant 0 : index
    %c0_0 = arith.constant 0 : index
    %0 = vector.load %arg2[%c0, %c0_0] : memref<20x108xbf16, #tpu.memory_space<vmem>>, vector<20x108xbf16>
    %c0_1 = arith.constant 0 : index
    %c0_2 = arith.constant 0 : index
    %1 = vector.load %arg1[%c0_1, %c0_2] : memref<108x128xbf16, #tpu.memory_space<vmem>>, vector<108x128xbf16>
    %cst = arith.constant dense<0.000000e+00> : vector<20x128xf32>
    %2 = tpu.matmul %0, %1, %cst {dimension_numbers = #tpu.dot_dimension_numbers<[1], [0], [0], [1], [0, 0, 1, 1], [], []>} : vector<20x108xbf16>, vector<108x128xbf16>, vector<20x128xf32> -> vector<20x128xf32>
    %c0_3 = arith.constant 0 : index
    %c0_4 = arith.constant 0 : index
    %3 = vector.load %arg3[%c0_3, %c0_4] : memref<20x1xf32, #tpu.memory_space<vmem>>, vector<20x1xf32>
    %4 = vector.broadcast %3 : vector<20x1xf32> to vector<20x128xf32>
    %5 = arith.addf %2, %4 : vector<20x128xf32>
    %cst_5 = arith.constant 0.000000e+00 : f32
    %6 = vector.broadcast %cst_5 : f32 to vector<20x128xf32>
    %7 = arith.maximumf %5, %6 : vector<20x128xf32>
    %8 = arith.truncf %7 : vector<20x128xf32> to vector<20x128xbf16>
    %c0_6 = arith.constant 0 : index
    %c0_7 = arith.constant 0 : index
    %9 = vector.load %arg4[%c0_6, %c0_7] : memref<20x128xbf16, #tpu.memory_space<vmem>>, vector<20x128xbf16>
    tpu.vector_store %arg4[%c0_6, %c0_7], %8 {strides = array<i32>} : memref<20x128xbf16, #tpu.memory_space<vmem>>, vector<20x128xbf16>,
    return
  }
  func.func @transform_0(%arg0: i32) -> (i32, i32) {
    %c0_i32 = arith.constant 0 : i32
    %c0_i32_0 = arith.constant 0 : i32
    return %c0_i32, %arg0 : i32, i32
  }
  func.func @transform_1(%arg0: i32) -> (i32, i32) {
    %c0_i32 = arith.constant 0 : i32
    %c0_i32_0 = arith.constant 0 : i32
    %c0_i32_1 = arith.constant 0 : i32
    return %c0_i32, %c0_i32_0 : i32, i32
  }
  func.func @transform_2(%arg0: i32) -> (i32, i32) {
    %c0_i32 = arith.constant 0 : i32
    %c0_i32_0 = arith.constant 0 : i32
    %c0_i32_1 = arith.constant 0 : i32
    return %c0_i32, %c0_i32_0 : i32, i32
  }
  func.func @transform_3(%arg0: i32) -> (i32, i32) {
    %c0_i32 = arith.constant 0 : i32
    %c0_i32_0 = arith.constant 0 : i32
    return %c0_i32, %arg0 : i32, i32
  }
}

module attributes {stable_mosaic.version = 11 : i64} {
  func.func @fused_matmul_kernel(%arg0: i32, %arg1: memref<180x128xbf16, #tpu.memory_space<vmem>>, %arg2: memref<40x180xbf16, #tpu.memory_space<vmem>>, %arg3: memref<40x1xf32, #tpu.memory_space<vmem>>, %arg4: memref<40x128xbf16, #tpu.memory_space<vmem>>) attributes {dimension_semantics = [#tpu.dimension_semantics<parallel>], iteration_bounds = array<i64: 1>, scalar_prefetch = 0 : i64, scratch_operands = 0 : i64, tpu.core_type = #tpu.core_type<tc>, window_params = [{transform_indices = @transform_0, window_bounds = array<i64: 180, 128>}, {pipeline_mode = #tpu.pipeline_mode<synchronous>, transform_indices = @transform_1, window_bounds = array<i64: 40, 180>}, {pipeline_mode = #tpu.pipeline_mode<synchronous>, transform_indices = @transform_2, window_bounds = array<i64: 40, 1>}, {transform_indices = @transform_3, window_bounds = array<i64: 40, 128>}]} {
    %c0 = arith.constant 0 : index
    %c0_0 = arith.constant 0 : index
    %0 = vector.load %arg2[%c0, %c0_0] : memref<40x180xbf16, #tpu.memory_space<vmem>>, vector<40x180xbf16>
    %c0_1 = arith.constant 0 : index
    %c0_2 = arith.constant 0 : index
    %1 = vector.load %arg1[%c0_1, %c0_2] : memref<180x128xbf16, #tpu.memory_space<vmem>>, vector<180x128xbf16>
    %cst = arith.constant dense<0.000000e+00> : vector<40x128xf32>
    %2 = tpu.matmul %0, %1, %cst {dimension_numbers = #tpu.dot_dimension_numbers<[1], [0], [0], [1], [0, 0, 1, 1], [], []>} : vector<40x180xbf16>, vector<180x128xbf16>, vector<40x128xf32> -> vector<40x128xf32>
    %c0_3 = arith.constant 0 : index
    %c0_4 = arith.constant 0 : index
    %3 = vector.load %arg3[%c0_3, %c0_4] : memref<40x1xf32, #tpu.memory_space<vmem>>, vector<40x1xf32>
    %4 = vector.broadcast %3 : vector<40x1xf32> to vector<40x128xf32>
    %5 = arith.addf %2, %4 : vector<40x128xf32>
    %cst_5 = arith.constant 0.000000e+00 : f32
    %6 = vector.broadcast %cst_5 : f32 to vector<40x128xf32>
    %7 = arith.maximumf %5, %6 : vector<40x128xf32>
    %8 = arith.truncf %7 : vector<40x128xf32> to vector<40x128xbf16>
    %c0_6 = arith.constant 0 : index
    %c0_7 = arith.constant 0 : index
    %9 = vector.load %arg4[%c0_6, %c0_7] : memref<40x128xbf16, #tpu.memory_space<vmem>>, vector<40x128xbf16>
    tpu.vector_store %arg4[%c0_6, %c0_7], %8 {strides = array<i32>} : memref<40x128xbf16, #tpu.memory_space<vmem>>, vector<40x128xbf16>,
    return
  }
  func.func @transform_0(%arg0: i32) -> (i32, i32) {
    %c0_i32 = arith.constant 0 : i32
    %c0_i32_0 = arith.constant 0 : i32
    return %c0_i32, %arg0 : i32, i32
  }
  func.func @transform_1(%arg0: i32) -> (i32, i32) {
    %c0_i32 = arith.constant 0 : i32
    %c0_i32_0 = arith.constant 0 : i32
    %c0_i32_1 = arith.constant 0 : i32
    return %c0_i32, %c0_i32_0 : i32, i32
  }
  func.func @transform_2(%arg0: i32) -> (i32, i32) {
    %c0_i32 = arith.constant 0 : i32
    %c0_i32_0 = arith.constant 0 : i32
    %c0_i32_1 = arith.constant 0 : i32
    return %c0_i32, %c0_i32_0 : i32, i32
  }
  func.func @transform_3(%arg0: i32) -> (i32, i32) {
    %c0_i32 = arith.constant 0 : i32
    %c0_i32_0 = arith.constant 0 : i32
    return %c0_i32, %arg0 : i32, i32
  }
}

module attributes {stable_mosaic.version = 11 : i64} {
  func.func @seb_fused_kernel(%arg0: i32, %arg1: memref<360x128xbf16, #tpu.memory_space<vmem>>, %arg2: memref<20x360xbf16, #tpu.memory_space<vmem>>, %arg3: memref<20x1xf32, #tpu.memory_space<vmem>>, %arg4: memref<20x128xbf16, #tpu.memory_space<vmem>>, %arg5: memref<20x20xbf16, #tpu.memory_space<vmem>>, %arg6: memref<20x1xf32, #tpu.memory_space<vmem>>, %arg7: memref<20x128xbf16, #tpu.memory_space<vmem>>) attributes {dimension_semantics = [#tpu.dimension_semantics<parallel>], iteration_bounds = array<i64: 1>, scalar_prefetch = 0 : i64, scratch_operands = 0 : i64, tpu.core_type = #tpu.core_type<tc>, window_params = [{transform_indices = @transform_0, window_bounds = array<i64: 360, 128>}, {pipeline_mode = #tpu.pipeline_mode<synchronous>, transform_indices = @transform_1, window_bounds = array<i64: 20, 360>}, {pipeline_mode = #tpu.pipeline_mode<synchronous>, transform_indices = @transform_2, window_bounds = array<i64: 20, 1>}, {transform_indices = @transform_3, window_bounds = array<i64: 20, 128>}, {pipeline_mode = #tpu.pipeline_mode<synchronous>, transform_indices = @transform_4, window_bounds = array<i64: 20, 20>}, {pipeline_mode = #tpu.pipeline_mode<synchronous>, transform_indices = @transform_5, window_bounds = array<i64: 20, 1>}, {transform_indices = @transform_6, window_bounds = array<i64: 20, 128>}]} {
    %c0 = arith.constant 0 : index
    %c0_0 = arith.constant 0 : index
    %0 = vector.load %arg2[%c0, %c0_0] : memref<20x360xbf16, #tpu.memory_space<vmem>>, vector<20x360xbf16>
    %c0_1 = arith.constant 0 : index
    %c0_2 = arith.constant 0 : index
    %1 = vector.load %arg1[%c0_1, %c0_2] : memref<360x128xbf16, #tpu.memory_space<vmem>>, vector<360x128xbf16>
    %cst = arith.constant dense<0.000000e+00> : vector<20x128xf32>
    %2 = tpu.matmul %0, %1, %cst {dimension_numbers = #tpu.dot_dimension_numbers<[1], [0], [0], [1], [0, 0, 1, 1], [], []>} : vector<20x360xbf16>, vector<360x128xbf16>, vector<20x128xf32> -> vector<20x128xf32>
    %c0_3 = arith.constant 0 : index
    %c0_4 = arith.constant 0 : index
    %3 = vector.load %arg3[%c0_3, %c0_4] : memref<20x1xf32, #tpu.memory_space<vmem>>, vector<20x1xf32>
    %4 = vector.broadcast %3 : vector<20x1xf32> to vector<20x128xf32>
    %5 = arith.addf %2, %4 : vector<20x128xf32>
    %c0_5 = arith.constant 0 : index
    %c0_6 = arith.constant 0 : index
    %6 = vector.load %arg5[%c0_5, %c0_6] : memref<20x20xbf16, #tpu.memory_space<vmem>>, vector<20x20xbf16>
    %c0_7 = arith.constant 0 : index
    %c0_8 = arith.constant 0 : index
    %7 = vector.load %arg4[%c0_7, %c0_8] : memref<20x128xbf16, #tpu.memory_space<vmem>>, vector<20x128xbf16>
    %cst_9 = arith.constant dense<0.000000e+00> : vector<20x128xf32>
    %8 = tpu.matmul %6, %7, %cst_9 {dimension_numbers = #tpu.dot_dimension_numbers<[1], [0], [0], [1], [0, 0, 1, 1], [], []>} : vector<20x20xbf16>, vector<20x128xbf16>, vector<20x128xf32> -> vector<20x128xf32>
    %c0_10 = arith.constant 0 : index
    %c0_11 = arith.constant 0 : index
    %9 = vector.load %arg6[%c0_10, %c0_11] : memref<20x1xf32, #tpu.memory_space<vmem>>, vector<20x1xf32>
    %10 = vector.broadcast %9 : vector<20x1xf32> to vector<20x128xf32>
    %11 = arith.addf %8, %10 : vector<20x128xf32>
    %12 = arith.mulf %5, %11 : vector<20x128xf32>
    %13 = arith.truncf %12 : vector<20x128xf32> to vector<20x128xbf16>
    %c0_12 = arith.constant 0 : index
    %c0_13 = arith.constant 0 : index
    %14 = vector.load %arg7[%c0_12, %c0_13] : memref<20x128xbf16, #tpu.memory_space<vmem>>, vector<20x128xbf16>
    tpu.vector_store %arg7[%c0_12, %c0_13], %13 {strides = array<i32>} : memref<20x128xbf16, #tpu.memory_space<vmem>>, vector<20x128xbf16>,
    return
  }
  func.func @transform_0(%arg0: i32) -> (i32, i32) {
    %c0_i32 = arith.constant 0 : i32
    %c0_i32_0 = arith.constant 0 : i32
    return %c0_i32, %arg0 : i32, i32
  }
  func.func @transform_1(%arg0: i32) -> (i32, i32) {
    %c0_i32 = arith.constant 0 : i32
    %c0_i32_0 = arith.constant 0 : i32
    %c0_i32_1 = arith.constant 0 : i32
    return %c0_i32, %c0_i32_0 : i32, i32
  }
  func.func @transform_2(%arg0: i32) -> (i32, i32) {
    %c0_i32 = arith.constant 0 : i32
    %c0_i32_0 = arith.constant 0 : i32
    %c0_i32_1 = arith.constant 0 : i32
    return %c0_i32, %c0_i32_0 : i32, i32
  }
  func.func @transform_3(%arg0: i32) -> (i32, i32) {
    %c0_i32 = arith.constant 0 : i32
    %c0_i32_0 = arith.constant 0 : i32
    return %c0_i32, %arg0 : i32, i32
  }
  func.func @transform_4(%arg0: i32) -> (i32, i32) {
    %c0_i32 = arith.constant 0 : i32
    %c0_i32_0 = arith.constant 0 : i32
    %c0_i32_1 = arith.constant 0 : i32
    return %c0_i32, %c0_i32_0 : i32, i32
  }
  func.func @transform_5(%arg0: i32) -> (i32, i32) {
    %c0_i32 = arith.constant 0 : i32
    %c0_i32_0 = arith.constant 0 : i32
    %c0_i32_1 = arith.constant 0 : i32
    return %c0_i32, %c0_i32_0 : i32, i32
  }
  func.func @transform_6(%arg0: i32) -> (i32, i32) {
    %c0_i32 = arith.constant 0 : i32
    %c0_i32_0 = arith.constant 0 : i32
    return %c0_i32, %arg0 : i32, i32
  }
}

module attributes {stable_mosaic.version = 11 : i64} {
  func.func @seb_fused_kernel(%arg0: i32, %arg1: memref<180x128xbf16, #tpu.memory_space<vmem>>, %arg2: memref<12x180xbf16, #tpu.memory_space<vmem>>, %arg3: memref<12x1xf32, #tpu.memory_space<vmem>>, %arg4: memref<12x128xbf16, #tpu.memory_space<vmem>>, %arg5: memref<12x12xbf16, #tpu.memory_space<vmem>>, %arg6: memref<12x1xf32, #tpu.memory_space<vmem>>, %arg7: memref<12x128xbf16, #tpu.memory_space<vmem>>) attributes {dimension_semantics = [#tpu.dimension_semantics<parallel>], iteration_bounds = array<i64: 1>, scalar_prefetch = 0 : i64, scratch_operands = 0 : i64, tpu.core_type = #tpu.core_type<tc>, window_params = [{transform_indices = @transform_0, window_bounds = array<i64: 180, 128>}, {pipeline_mode = #tpu.pipeline_mode<synchronous>, transform_indices = @transform_1, window_bounds = array<i64: 12, 180>}, {pipeline_mode = #tpu.pipeline_mode<synchronous>, transform_indices = @transform_2, window_bounds = array<i64: 12, 1>}, {transform_indices = @transform_3, window_bounds = array<i64: 12, 128>}, {pipeline_mode = #tpu.pipeline_mode<synchronous>, transform_indices = @transform_4, window_bounds = array<i64: 12, 12>}, {pipeline_mode = #tpu.pipeline_mode<synchronous>, transform_indices = @transform_5, window_bounds = array<i64: 12, 1>}, {transform_indices = @transform_6, window_bounds = array<i64: 12, 128>}]} {
    %c0 = arith.constant 0 : index
    %c0_0 = arith.constant 0 : index
    %0 = vector.load %arg2[%c0, %c0_0] : memref<12x180xbf16, #tpu.memory_space<vmem>>, vector<12x180xbf16>
    %c0_1 = arith.constant 0 : index
    %c0_2 = arith.constant 0 : index
    %1 = vector.load %arg1[%c0_1, %c0_2] : memref<180x128xbf16, #tpu.memory_space<vmem>>, vector<180x128xbf16>
    %cst = arith.constant dense<0.000000e+00> : vector<12x128xf32>
    %2 = tpu.matmul %0, %1, %cst {dimension_numbers = #tpu.dot_dimension_numbers<[1], [0], [0], [1], [0, 0, 1, 1], [], []>} : vector<12x180xbf16>, vector<180x128xbf16>, vector<12x128xf32> -> vector<12x128xf32>
    %c0_3 = arith.constant 0 : index
    %c0_4 = arith.constant 0 : index
    %3 = vector.load %arg3[%c0_3, %c0_4] : memref<12x1xf32, #tpu.memory_space<vmem>>, vector<12x1xf32>
    %4 = vector.broadcast %3 : vector<12x1xf32> to vector<12x128xf32>
    %5 = arith.addf %2, %4 : vector<12x128xf32>
    %c0_5 = arith.constant 0 : index
    %c0_6 = arith.constant 0 : index
    %6 = vector.load %arg5[%c0_5, %c0_6] : memref<12x12xbf16, #tpu.memory_space<vmem>>, vector<12x12xbf16>
    %c0_7 = arith.constant 0 : index
    %c0_8 = arith.constant 0 : index
    %7 = vector.load %arg4[%c0_7, %c0_8] : memref<12x128xbf16, #tpu.memory_space<vmem>>, vector<12x128xbf16>
    %cst_9 = arith.constant dense<0.000000e+00> : vector<12x128xf32>
    %8 = tpu.matmul %6, %7, %cst_9 {dimension_numbers = #tpu.dot_dimension_numbers<[1], [0], [0], [1], [0, 0, 1, 1], [], []>} : vector<12x12xbf16>, vector<12x128xbf16>, vector<12x128xf32> -> vector<12x128xf32>
    %c0_10 = arith.constant 0 : index
    %c0_11 = arith.constant 0 : index
    %9 = vector.load %arg6[%c0_10, %c0_11] : memref<12x1xf32, #tpu.memory_space<vmem>>, vector<12x1xf32>
    %10 = vector.broadcast %9 : vector<12x1xf32> to vector<12x128xf32>
    %11 = arith.addf %8, %10 : vector<12x128xf32>
    %12 = arith.mulf %5, %11 : vector<12x128xf32>
    %13 = arith.truncf %12 : vector<12x128xf32> to vector<12x128xbf16>
    %c0_12 = arith.constant 0 : index
    %c0_13 = arith.constant 0 : index
    %14 = vector.load %arg7[%c0_12, %c0_13] : memref<12x128xbf16, #tpu.memory_space<vmem>>, vector<12x128xbf16>
    tpu.vector_store %arg7[%c0_12, %c0_13], %13 {strides = array<i32>} : memref<12x128xbf16, #tpu.memory_space<vmem>>, vector<12x128xbf16>,
    return
  }
  func.func @transform_0(%arg0: i32) -> (i32, i32) {
    %c0_i32 = arith.constant 0 : i32
    %c0_i32_0 = arith.constant 0 : i32
    return %c0_i32, %arg0 : i32, i32
  }
  func.func @transform_1(%arg0: i32) -> (i32, i32) {
    %c0_i32 = arith.constant 0 : i32
    %c0_i32_0 = arith.constant 0 : i32
    %c0_i32_1 = arith.constant 0 : i32
    return %c0_i32, %c0_i32_0 : i32, i32
  }
  func.func @transform_2(%arg0: i32) -> (i32, i32) {
    %c0_i32 = arith.constant 0 : i32
    %c0_i32_0 = arith.constant 0 : i32
    %c0_i32_1 = arith.constant 0 : i32
    return %c0_i32, %c0_i32_0 : i32, i32
  }
  func.func @transform_3(%arg0: i32) -> (i32, i32) {
    %c0_i32 = arith.constant 0 : i32
    %c0_i32_0 = arith.constant 0 : i32
    return %c0_i32, %arg0 : i32, i32
  }
  func.func @transform_4(%arg0: i32) -> (i32, i32) {
    %c0_i32 = arith.constant 0 : i32
    %c0_i32_0 = arith.constant 0 : i32
    %c0_i32_1 = arith.constant 0 : i32
    return %c0_i32, %c0_i32_0 : i32, i32
  }
  func.func @transform_5(%arg0: i32) -> (i32, i32) {
    %c0_i32 = arith.constant 0 : i32
    %c0_i32_0 = arith.constant 0 : i32
    %c0_i32_1 = arith.constant 0 : i32
    return %c0_i32, %c0_i32_0 : i32, i32
  }
  func.func @transform_6(%arg0: i32) -> (i32, i32) {
    %c0_i32 = arith.constant 0 : i32
    %c0_i32_0 = arith.constant 0 : i32
    return %c0_i32, %arg0 : i32, i32
  }
}

module attributes {stable_mosaic.version = 11 : i64} {
  func.func @seb_fused_kernel(%arg0: i32, %arg1: memref<108x256xbf16, #tpu.memory_space<vmem>>, %arg2: memref<6x108xbf16, #tpu.memory_space<vmem>>, %arg3: memref<6x1xf32, #tpu.memory_space<vmem>>, %arg4: memref<6x256xbf16, #tpu.memory_space<vmem>>, %arg5: memref<6x6xbf16, #tpu.memory_space<vmem>>, %arg6: memref<6x1xf32, #tpu.memory_space<vmem>>, %arg7: memref<1x6xbf16, #tpu.memory_space<vmem>>, %arg8: memref<1x1xf32, #tpu.memory_space<vmem>>, %arg9: memref<1x256xf32, #tpu.memory_space<vmem>>) attributes {dimension_semantics = [#tpu.dimension_semantics<parallel>], iteration_bounds = array<i64: 2>, scalar_prefetch = 0 : i64, scratch_operands = 0 : i64, tpu.core_type = #tpu.core_type<tc>, window_params = [{transform_indices = @transform_0, window_bounds = array<i64: 108, 256>}, {pipeline_mode = #tpu.pipeline_mode<synchronous>, transform_indices = @transform_1, window_bounds = array<i64: 6, 108>}, {pipeline_mode = #tpu.pipeline_mode<synchronous>, transform_indices = @transform_2, window_bounds = array<i64: 6, 1>}, {transform_indices = @transform_3, window_bounds = array<i64: 6, 256>}, {pipeline_mode = #tpu.pipeline_mode<synchronous>, transform_indices = @transform_4, window_bounds = array<i64: 6, 6>}, {pipeline_mode = #tpu.pipeline_mode<synchronous>, transform_indices = @transform_5, window_bounds = array<i64: 6, 1>}, {pipeline_mode = #tpu.pipeline_mode<synchronous>, transform_indices = @transform_6, window_bounds = array<i64: 1, 6>}, {pipeline_mode = #tpu.pipeline_mode<synchronous>, transform_indices = @transform_7, window_bounds = array<i64: 1, 1>}, {transform_indices = @transform_8, window_bounds = array<i64: 1, 256>}]} {
    %c0 = arith.constant 0 : index
    %c0_0 = arith.constant 0 : index
    %0 = vector.load %arg2[%c0, %c0_0] : memref<6x108xbf16, #tpu.memory_space<vmem>>, vector<6x108xbf16>
    %c0_1 = arith.constant 0 : index
    %c0_2 = arith.constant 0 : index
    %1 = vector.load %arg1[%c0_1, %c0_2] : memref<108x256xbf16, #tpu.memory_space<vmem>>, vector<108x256xbf16>
    %cst = arith.constant dense<0.000000e+00> : vector<6x256xf32>
    %2 = tpu.matmul %0, %1, %cst {dimension_numbers = #tpu.dot_dimension_numbers<[1], [0], [0], [1], [0, 0, 1, 1], [], []>} : vector<6x108xbf16>, vector<108x256xbf16>, vector<6x256xf32> -> vector<6x256xf32>
    %c0_3 = arith.constant 0 : index
    %c0_4 = arith.constant 0 : index
    %3 = vector.load %arg3[%c0_3, %c0_4] : memref<6x1xf32, #tpu.memory_space<vmem>>, vector<6x1xf32>
    %4 = vector.broadcast %3 : vector<6x1xf32> to vector<6x256xf32>
    %5 = arith.addf %2, %4 : vector<6x256xf32>
    %c0_5 = arith.constant 0 : index
    %c0_6 = arith.constant 0 : index
    %6 = vector.load %arg5[%c0_5, %c0_6] : memref<6x6xbf16, #tpu.memory_space<vmem>>, vector<6x6xbf16>
    %c0_7 = arith.constant 0 : index
    %c0_8 = arith.constant 0 : index
    %7 = vector.load %arg4[%c0_7, %c0_8] : memref<6x256xbf16, #tpu.memory_space<vmem>>, vector<6x256xbf16>
    %cst_9 = arith.constant dense<0.000000e+00> : vector<6x256xf32>
    %8 = tpu.matmul %6, %7, %cst_9 {dimension_numbers = #tpu.dot_dimension_numbers<[1], [0], [0], [1], [0, 0, 1, 1], [], []>} : vector<6x6xbf16>, vector<6x256xbf16>, vector<6x256xf32> -> vector<6x256xf32>
    %c0_10 = arith.constant 0 : index
    %c0_11 = arith.constant 0 : index
    %9 = vector.load %arg6[%c0_10, %c0_11] : memref<6x1xf32, #tpu.memory_space<vmem>>, vector<6x1xf32>
    %10 = vector.broadcast %9 : vector<6x1xf32> to vector<6x256xf32>
    %11 = arith.addf %8, %10 : vector<6x256xf32>
    %12 = arith.mulf %5, %11 : vector<6x256xf32>
    %c0_12 = arith.constant 0 : index
    %c0_13 = arith.constant 0 : index
    %13 = vector.load %arg7[%c0_12, %c0_13] : memref<1x6xbf16, #tpu.memory_space<vmem>>, vector<1x6xbf16>
    %14 = arith.extf %13 : vector<1x6xbf16> to vector<1x6xf32>
    %cst_14 = arith.constant dense<0.000000e+00> : vector<1x256xf32>
    %15 = tpu.matmul %14, %12, %cst_14 {dimension_numbers = #tpu.dot_dimension_numbers<[1], [0], [0], [1], [0, 0, 1, 1], [], []>} : vector<1x6xf32>, vector<6x256xf32>, vector<1x256xf32> -> vector<1x256xf32>
    %c0_15 = arith.constant 0 : index
    %c0_16 = arith.constant 0 : index
    %16 = vector.load %arg8[%c0_15, %c0_16] : memref<1x1xf32, #tpu.memory_space<vmem>>, vector<1x1xf32>
    %17 = vector.broadcast %16 : vector<1x1xf32> to vector<1x256xf32>
    %18 = arith.addf %15, %17 : vector<1x256xf32>
    %c0_17 = arith.constant 0 : index
    %c0_18 = arith.constant 0 : index
    %19 = vector.load %arg9[%c0_17, %c0_18] : memref<1x256xf32, #tpu.memory_space<vmem>>, vector<1x256xf32>
    tpu.vector_store %arg9[%c0_17, %c0_18], %18 {strides = array<i32>} : memref<1x256xf32, #tpu.memory_space<vmem>>, vector<1x256xf32>,
    return
  }
  func.func @transform_0(%arg0: i32) -> (i32, i32) {
    %c0_i32 = arith.constant 0 : i32
    %c0_i32_0 = arith.constant 0 : i32
    return %c0_i32, %arg0 : i32, i32
  }
  func.func @transform_1(%arg0: i32) -> (i32, i32) {
    %c0_i32 = arith.constant 0 : i32
    %c0_i32_0 = arith.constant 0 : i32
    %c0_i32_1 = arith.constant 0 : i32
    return %c0_i32, %c0_i32_0 : i32, i32
  }
  func.func @transform_2(%arg0: i32) -> (i32, i32) {
    %c0_i32 = arith.constant 0 : i32
    %c0_i32_0 = arith.constant 0 : i32
    %c0_i32_1 = arith.constant 0 : i32
    return %c0_i32, %c0_i32_0 : i32, i32
  }
  func.func @transform_3(%arg0: i32) -> (i32, i32) {
    %c0_i32 = arith.constant 0 : i32
    %c0_i32_0 = arith.constant 0 : i32
    return %c0_i32, %arg0 : i32, i32
  }
  func.func @transform_4(%arg0: i32) -> (i32, i32) {
    %c0_i32 = arith.constant 0 : i32
    %c0_i32_0 = arith.constant 0 : i32
    %c0_i32_1 = arith.constant 0 : i32
    return %c0_i32, %c0_i32_0 : i32, i32
  }
  func.func @transform_5(%arg0: i32) -> (i32, i32) {
    %c0_i32 = arith.constant 0 : i32
    %c0_i32_0 = arith.constant 0 : i32
    %c0_i32_1 = arith.constant 0 : i32
    return %c0_i32, %c0_i32_0 : i32, i32
  }
  func.func @transform_6(%arg0: i32) -> (i32, i32) {
    %c0_i32 = arith.constant 0 : i32
    %c0_i32_0 = arith.constant 0 : i32
    %c0_i32_1 = arith.constant 0 : i32
    return %c0_i32, %c0_i32_0 : i32, i32
  }
  func.func @transform_7(%arg0: i32) -> (i32, i32) {
    %c0_i32 = arith.constant 0 : i32
    %c0_i32_0 = arith.constant 0 : i32
    %c0_i32_1 = arith.constant 0 : i32
    return %c0_i32, %c0_i32_0 : i32, i32
  }
  func.func @transform_8(%arg0: i32) -> (i32, i32) {
    %c0_i32 = arith.constant 0 : i32
    %c0_i32_0 = arith.constant 0 : i32
    return %c0_i32, %arg0 : i32, i32
  }
}

</mosaic_0001>

<llo_original>
// kernel: _lambda_.7
$region0: #{_lambda_.7}
  #allocation0 [shape = 'u32[]', space=smem, size = 0x4, offset = 0x4, fixed_abs, tag = 'smem constant byte address 0x4 - core index']
  #allocation1 [shape = 'u32[144,128]{1,0:T(1,128)}', space=vmem, size = 0x12000, scoped, tag = 'internal scratch']
  %s0 = inlined_call_operand.vmem [shape: bf16[27,512], index: 0, kind: input, shape index: {}]
  %s1 = inlined_call_operand.vmem [shape: bf16[6,27], index: 1, kind: input, shape index: {}]
  %s2 = inlined_call_operand.vmem [shape: f32[6,1], index: 2, kind: input, shape index: {}]
  %s3 = inlined_call_operand.vmem [shape: bf16[6,512], index: 3, kind: output, shape index: {}]
  %s4 = sld [smem:[#allocation0]]
  $region83: #{_lambda_.7} parent=0
    _
  %s6 = ssub.s32 1, %s4
  %s7 = scalar_select 0, %s6, %s4
  $region1: #{_lambda_.7} parent=0
    #allocation2 [shape = 'u8[32768]{0}', space=vmem, size = 0x8000, scoped, tag = 'input window, operand 0']
    loop: start=0, step=1, limit=4
    $region2: #{_lambda_.7} parent=1 // loop_pre_header
      _
    $region3: #{_lambda_.7} parent=1 // loop_header
      %s9 = sphi 0, %s13
      %p10 = scmp.ge.s32.totalorder %s9, 4
      %s19 = sphi 0, %s21
      %s22 = sphi 0, %s19
      %s23 = sphi 0, %s22
      %s39 = sphi 0, %s23
      %s43 = sphi 0, %s43
      %s45 = sphi 0, %s43
      %s46 = sphi 0, %s45
      %s60 = sphi 0, %s46
      %s64 = sphi 0, %s64
      %s66 = sphi 0, %s64
      %s67 = sphi 0, %s66
      %s81 = sphi 0, %s67
      %s87 = sphi 0, %s89
      %s90 = sphi 0, %s87
      %s91 = sphi 0, %s90
      %s107 = sphi 0, %s91
    $region4: #{_lambda_.7} parent=1 // loop_header_branch
      %12 = sbr.rel (%p10) target = $region8
    $region5: #{_lambda_.7} parent=1 // loop_body
      %s14 = ssub.s32 %s9, 1
      %s15 = ssub.s32 %s9, 2
      %s16 = sadd.s32 %s9, 1
      %s17 = ssub.s32 %s9, %s16
      %p18 = scmp.eq.s32.totalorder %s17, 0
      %s20 = sadd.s32 %s19, 1
      %s21 = scalar_select %p18, %s19, %s20
      %p24 = pneg %p18
      %p25 = scmp.eq.s32.totalorder %s9, 1
      %p26 = por %p24, %p25
      %p27 = scmp.ne.s32.totalorder %s19, %s22
      %p28 = scmp.eq.s32.totalorder %s9, 0
      %p29 = por %p27, %p28
      %p30 = scmp.ne.s32.totalorder %s19, %s22
      %p31 = scmp.eq.s32.totalorder %s14, 1
      %p32 = por %p30, %p31
      %p33 = scmp.ne.s32.totalorder %s22, %s23
      %p34 = scmp.eq.s32.totalorder %s14, 0
      %p35 = por %p33, %p34
      %p36 = scmp.ne.s32.totalorder %s22, %s23
      %p37 = scmp.eq.s32.totalorder %s15, 1
      %p38 = por %p36, %p37
      %p40 = scmp.ne.s32.totalorder %s23, %s39
      %p41 = scmp.eq.s32.totalorder %s15, 0
      %p42 = por %p40, %p41
      %s44 = sadd.s32 %s43, 1
      %p47 = scmp.eq.s32.totalorder %s9, 1
      %p48 = scmp.ne.s32.totalorder %s43, %s45
      %p49 = scmp.eq.s32.totalorder %s9, 0
      %p50 = por %p48, %p49
      %p51 = scmp.ne.s32.totalorder %s43, %s45
      %p52 = scmp.eq.s32.totalorder %s14, 1
      %p53 = por %p51, %p52
      %p54 = scmp.ne.s32.totalorder %s45, %s46
      %p55 = scmp.eq.s32.totalorder %s14, 0
      %p56 = por %p54, %p55
      %p57 = scmp.ne.s32.totalorder %s45, %s46
      %p58 = scmp.eq.s32.totalorder %s15, 1
      %p59 = por %p57, %p58
      %p61 = scmp.ne.s32.totalorder %s46, %s60
      %p62 = scmp.eq.s32.totalorder %s15, 0
      %p63 = por %p61, %p62
      %s65 = sadd.s32 %s64, 1
      %p68 = scmp.eq.s32.totalorder %s9, 1
      %p69 = scmp.ne.s32.totalorder %s64, %s66
      %p70 = scmp.eq.s32.totalorder %s9, 0
      %p71 = por %p69, %p70
      %p72 = scmp.ne.s32.totalorder %s64, %s66
      %p73 = scmp.eq.s32.totalorder %s14, 1
      %p74 = por %p72, %p73
      %p75 = scmp.ne.s32.totalorder %s66, %s67
      %p76 = scmp.eq.s32.totalorder %s14, 0
      %p77 = por %p75, %p76
      %p78 = scmp.ne.s32.totalorder %s66, %s67
      %p79 = scmp.eq.s32.totalorder %s15, 1
      %p80 = por %p78, %p79
      %p82 = scmp.ne.s32.totalorder %s67, %s81
      %p83 = scmp.eq.s32.totalorder %s15, 0
      %p84 = por %p82, %p83
      %s85 = ssub.s32 %s9, %s16
      %p86 = scmp.eq.s32.totalorder %s85, 0
      %s88 = sadd.s32 %s87, 1
      %s89 = scalar_select %p86, %s87, %s88
      %p92 = pneg %p86
      %p93 = scmp.eq.s32.totalorder %s9, 1
      %p94 = por %p92, %p93
      %p95 = scmp.ne.s32.totalorder %s87, %s90
      %p96 = scmp.eq.s32.totalorder %s9, 0
      %p97 = por %p95, %p96
      %p98 = scmp.ne.s32.totalorder %s87, %s90
      %p99 = scmp.eq.s32.totalorder %s14, 1
      %p100 = por %p98, %p99
      %p101 = scmp.ne.s32.totalorder %s90, %s91
      %p102 = scmp.eq.s32.totalorder %s14, 0
      %p103 = por %p101, %p102
      %p104 = scmp.ne.s32.totalorder %s90, %s91
      %p105 = scmp.eq.s32.totalorder %s15, 1
      %p106 = por %p104, %p105
      %p108 = scmp.ne.s32.totalorder %s91, %s107
      %p109 = scmp.eq.s32.totalorder %s15, 0
      %p110 = por %p108, %p109
      %p111 = scmp.le.s32.totalorder 1, %s9
      %p112 = scmp.lt.s32.totalorder %s9, 3
      %p113 = pnand %p111, %p112
      %p114 = pneg %p113
      // Predicated region
      $region9: #{_lambda_.7} parent=5 // pred_check
        _
      $region10: #{_lambda_.7} parent=5 // pred_check_branch
        %116 = sbr.rel (%p113) target = $region12
      $region11: #{_lambda_.7} parent=5 // pred_region
        %s117 = ssub.s32 %s9, 1
        // Predicated region
        $region13: #{_lambda_.7} parent=11 // pred_check
          %p118 = pneg %p56
        $region14: #{_lambda_.7} parent=11 // pred_check_branch
          %120 = sbr.rel (%p118) target = $region16
        $region15: #{_lambda_.7} parent=11 // pred_region
          _
        $region16: #{_lambda_.7} parent=11 // pred_fallthru
          _
        // Predicated region
        $region17: #{_lambda_.7} parent=11 // pred_check
          %p121 = pneg %p77
        $region18: #{_lambda_.7} parent=11 // pred_check_branch
          %123 = sbr.rel (%p121) target = $region20
        $region19: #{_lambda_.7} parent=11 // pred_region
          _
        $region20: #{_lambda_.7} parent=11 // pred_fallthru
          _
      $region12: #{_lambda_.7} parent=5 // pred_fallthru
        _
      %p124 = scmp.lt.s32.totalorder %s9, 2
      // Predicated region
      $region21: #{_lambda_.7} parent=5 // pred_check
        %p125 = pneg %p124
      $region22: #{_lambda_.7} parent=5 // pred_check_branch
        %127 = sbr.rel (%p125) target = $region24
      $region23: #{_lambda_.7} parent=5 // pred_region
        // Predicated region
        $region25: #{_lambda_.7} parent=23 // pred_check
          %p128 = pneg %p29
        $region26: #{_lambda_.7} parent=23 // pred_check_branch
          %130 = sbr.rel (%p128) target = $region28
        $region27: #{_lambda_.7} parent=23 // pred_region
          %s131 = sand.u32 %s19, 1
          %s132 = sand.u32 %s19, 1
          %s133 = smul.addr %s132, 32
          %s134 = scalar_lea.vmem [#allocation2], %s133
          %s135 = smul.u32 2, %s9
          %s136 = smul.addr %s135, 4
          %s137 = scalar_lea.vmem %s0, %s136
          // Predicated region
          $region29: #{_lambda_.7} parent=27 // pred_check
            _
          $region30: #{_lambda_.7} parent=27 // pred_check_branch
            %139 = sbr.rel (0) target = $region32
          $region31: #{_lambda_.7} parent=27 // pred_region
            // Predicated region
            $region33: #{_lambda_.7} parent=31 // pred_check
              _
            $region34: #{_lambda_.7} parent=31 // pred_check_branch
              %141 = sbr.rel (0) target = $region36
            $region35: #{_lambda_.7} parent=31 // pred_region
              // Predicated region
              $region48: #{_lambda_.7} parent=35 // pred_check
                _
              $region49: #{_lambda_.7} parent=35 // pred_check_branch
                %162 = sbr.rel (0) target = $region51
              $region50: #{_lambda_.7} parent=35 // pred_region
                loop: start=0, step=1, limit=1
                $region52: #{_lambda_.7} parent=50 // loop_pre_header
                  _
                $region53: #{_lambda_.7} parent=50 // loop_header
                  %s164 = sphi 0, %s168
                  %p165 = scmp.ge.s32.totalorder %s164, 1
                  %s169 = sphi %s137, %s137
                  %s170 = sphi %s134, %s134
                $region54: #{_lambda_.7} parent=50 // loop_header_branch
                  %167 = sbr.rel (%p165) target = $region58
                $region55: #{_lambda_.7} parent=50 // loop_body
                  %v171 = vld [vmem:[%s169] sm:$0xff]
                  %172 = vst [vmem:[%s170] sm:$0xff] %v171
                  %v173 = vld [vmem:[%s169 + $0x10] sm:$0xff]
                  %174 = vst [vmem:[%s170 + $0x8] sm:$0xff] %v173
                  %v175 = vld [vmem:[%s169 + $0x20] sm:$0xff]
                  %176 = vst [vmem:[%s170 + $0x10] sm:$0xff] %v175
                  %v177 = vld [vmem:[%s169 + $0x30] sm:$0xff]
                  %178 = vst [vmem:[%s170 + $0x18] sm:$0xff] %v177
                $region56: #{_lambda_.7} parent=50 // loop_footer
                  %s168 = sadd.s32 1, %s164
                $region57: #{_lambda_.7} parent=50 // loop_footer_branch
                  %163 = sbr.rel target = $region53
                $region58: #{_lambda_.7} parent=50 // loop_exit
                  _
              $region51: #{_lambda_.7} parent=35 // pred_fallthru
                _
              // Predicated region
              $region59: #{_lambda_.7} parent=35 // pred_check
                _
              $region60: #{_lambda_.7} parent=35 // pred_check_branch
                %180 = sbr.rel target = $region62
              $region61: #{_lambda_.7} parent=35 // pred_region
                _
              $region62: #{_lambda_.7} parent=35 // pred_fallthru
                _
            $region36: #{_lambda_.7} parent=31 // pred_fallthru
              _
            // Predicated region
            $region37: #{_lambda_.7} parent=31 // pred_check
              _
            $region38: #{_lambda_.7} parent=31 // pred_check_branch
              %143 = sbr.rel target = $region40
            $region39: #{_lambda_.7} parent=31 // pred_region
              loop: start=0, step=1, limit=1
              $region41: #{_lambda_.7} parent=39 // loop_pre_header
                _
              $region42: #{_lambda_.7} parent=39 // loop_header
                %s146 = sphi 0, %s150
                %p147 = scmp.ge.s32.totalorder %s146, 1
                %s151 = sphi %s137, %s137
                %s152 = sphi %s134, %s134
              $region43: #{_lambda_.7} parent=39 // loop_header_branch
                %149 = sbr.rel (%p147) target = $region47
              $region44: #{_lambda_.7} parent=39 // loop_body
                %v153 = vld [vmem:[%s151] sm:$0xff]
                %154 = vst [vmem:[%s152] sm:$0xff] %v153
                %v155 = vld [vmem:[%s151 + $0x10] sm:$0xff]
                %156 = vst [vmem:[%s152 + $0x8] sm:$0xff] %v155
                %v157 = vld [vmem:[%s151 + $0x20] sm:$0xff]
                %158 = vst [vmem:[%s152 + $0x10] sm:$0xff] %v157
                %v159 = vld [vmem:[%s151 + $0x30] sm:$0xff]
                %160 = vst [vmem:[%s152 + $0x18] sm:$0xff] %v159
              $region45: #{_lambda_.7} parent=39 // loop_footer
                %s150 = sadd.s32 1, %s146
              $region46: #{_lambda_.7} parent=39 // loop_footer_branch
                %145 = sbr.rel target = $region42
              $region47: #{_lambda_.7} parent=39 // loop_exit
                _
            $region40: #{_lambda_.7} parent=31 // pred_fallthru
              _
          $region32: #{_lambda_.7} parent=27 // pred_fallthru
            _
          %181 = vnop
        $region28: #{_lambda_.7} parent=23 // pred_fallthru
          _
      $region24: #{_lambda_.7} parent=5 // pred_fallthru
        _
      %p182 = scmp.le.s32.totalorder 1, %s9
      %p183 = scmp.lt.s32.totalorder %s9, 3
      %p184 = pnand %p182, %p183
      %p185 = pneg %p184
      // Predicated region
      $region63: #{_lambda_.7} parent=5 // pred_check
        _
      $region64: #{_lambda_.7} parent=5 // pred_check_branch
        %187 = sbr.rel (%p184) target = $region66
      $region65: #{_lambda_.7} parent=5 // pred_region
        %s188 = ssub.s32 %s9, 1
        %s189 = sand.u32 %s22, 1
        %s190 = sand.u32 %s22, 1
        %s191 = smul.addr %s190, 32
        %s192 = scalar_lea.vmem [#allocation2], %s191
        // Predicated region
        $region67: #{_lambda_.7} parent=65 // pred_check
          %p193 = pneg %p35
        $region68: #{_lambda_.7} parent=65 // pred_check_branch
          %195 = sbr.rel (%p193) target = $region70
        $region69: #{_lambda_.7} parent=65 // pred_region
          _
        $region70: #{_lambda_.7} parent=65 // pred_fallthru
          _
        %s196 = sand.u32 %s22, 1
        %s197 = sand.u32 %s22, 1
        %s198 = smul.addr %s197, 32
        %s199 = scalar_lea.vmem [#allocation2], %s198
        %p200 = pneg %p35
        %p201 = pneg %p32
        %p202 = pneg %p56
        %p203 = pneg %p53
        %p204 = pneg %p77
        %p205 = pneg %p74
        %p206 = pneg %p103
        %p207 = pneg %p100
        %s208 = smul.u32 2, %s14
        %p209 = scmp.lt.s32.totalorder %s208, 3
        %s210 = scalar_select %p209, %s208, 3
        %s211 = smul.addr %s210, 4
        %s212 = scalar_lea.vmem %s3, %s211
        %s213 = smul.u32 2, %s14
        %s214 = smul.u32 2, %s14
        %p215 = scmp.lt.s32.totalorder %s214, 3
        %s216 = scalar_select %p215, %s214, 3
        %s217 = smul.addr %s216, 4
        %s218 = scalar_lea.vmem %s3, %s217
        %s219 = smul.u32 2, %s14
        %v221 = vld [vmem:[%s1] sm:$0x7]
        %v222 = vld [vmem:[%s192] sm:$0xff]
        %v223 = vld [vmem:[%s192 + $0x8] sm:$0xff]
        %v224 = vld [vmem:[%s192 + $0x10] sm:$0xff]
        %v225 = vld [vmem:[%s192 + $0x18] sm:$0x33]
        %v226 = vld [vmem:[%s2] sm:$0x3f]
        %228 = vset.pattern.permute.xlu0 0
        %229 = vperm.xlu0 %228, %v226
        %v230 = vpop.permute.xlu0 %229
        %v236 = vunpack.c.l.b16 %v222
        %v237 = vunpack.c.h.b16 %v222
        %v238 = vunpack.c.l.b16 %v223
        %v239 = vunpack.c.h.b16 %v223
        %v240 = vunpack.c.l.b16 %v224
        %v241 = vunpack.c.h.b16 %v224
        %v242 = vunpack.c.l.b16 %v225
        %v243 = vunpack.c.h.b16 %v225
        %v244 = vpack.c.b16 %v238, %v236
        %v245 = vpack.c.b16 %v239, %v237
        %v246 = vpack.c.b16 %v242, %v240
        %v247 = vpack.c.b16 %v243, %v241
        %vm250 = vcmask 220160
        %v252 = vsel %vm250, %v221, 0
        %vm254 = vcmask 1044480
        %vm255 = vcmask 1045504
        %v256 = vsel %vm254, 4294967295, 65535
        %v257 = vsel %vm255, %v256, 0
        %v259 = vand.u32 %v246, %v257
        %v262 = vand.u32 %v247, %v257
        %264 = vmatprep.subr.bf16.mxu0 %v245
        %265 = vmatpush1.bf16.msra.mxu0 %v244
        %266 = vmatprep.subr.bf16.mxu0 %v262
        %267 = vmatpush1.bf16.msra.mxu0 %v259
        %268 = vmatprep.subr.bf16.mxu0 0
        %269 = vmatpush1.bf16.msra.mxu0 0
        %270 = vmatprep.subr.bf16.mxu0 0
        %271 = vmatpush1.bf16.msra.mxu0 0
        %272 = vmatprep.subr.bf16.mxu0 0
        %273 = vmatpush1.bf16.msra.mxu0 0
        %274 = vmatprep.subr.bf16.mxu0 0
        %275 = vmatpush1.bf16.msra.mxu0 0
        %276 = vmatprep.subr.bf16.mxu0 0
        %277 = vmatpush1.bf16.msra.mxu0 0
        %278 = vmatprep.subr.bf16.mxu0 0
        %279 = vmatpush1.bf16.msra.mxu0 0
        %280 = vmatprep.subr.bf16.mxu0 0
        %281 = vmatpush1.bf16.msra.mxu0 0
        %282 = vmatprep.subr.bf16.mxu0 0
        %283 = vmatpush1.bf16.msra.mxu0 0
        %284 = vmatprep.subr.bf16.mxu0 0
        %285 = vmatpush1.bf16.msra.mxu0 0
        %286 = vmatprep.subr.bf16.mxu0 0
        %287 = vmatpush1.bf16.msra.mxu0 0
        %288 = vmatprep.subr.bf16.mxu0 0
        %289 = vmatpush1.bf16.msra.mxu0 0
        %290 = vmatprep.subr.bf16.mxu0 0
        %291 = vmatpush1.bf16.msra.mxu0 0
        %292 = vmatprep.subr.bf16.mxu0 0
        %293 = vmatpush1.bf16.msra.mxu0 0
        %294 = vmatprep.subr.bf16.mxu0 0
        %295 = vmatpush1.bf16.msra.mxu0 0
        %296 = vmatprep.mubr.bf16.mxu0 0
        %297 = vmatmul.mubr.bf16.gmra.mrb[0].mxu0 %v252
        %v298 = vpop.f32.mrb[0].mxu0
        %v299 = vadd.f32 %v230, %v298
        %v300 = vpop.f32.mrb[0].mxu0
        %v301 = vadd.f32 %v230, %v300
        %v302 = vpop.f32.mrb[0].mxu0
        %v303 = vpop.f32.mrb[0].mxu0
        %304 = vdwg.mxu0
        %v305 = vmax.f32 %v299, 0.0
        %v306 = vmax.f32 %v301, 0.0
        %v307 = vpack.c.bf16 %v305, %v305
        %v308 = vpack.c.bf16 %v306, %v306
        %v311 = vunpack.c.l.b16 %v307
        %v312 = vunpack.c.l.b16 %v308
        %v313 = vpack.c.b16 %v312, %v311
        %315 = vst [vmem:[%s218] sm:$0x77] %v313
        %s316 = smul.u32 2, %s14
        %p317 = scmp.lt.s32.totalorder %s316, 3
        %s318 = scalar_select %p317, %s316, 3
        %s319 = smul.addr %s318, 4
        %s320 = scalar_lea.vmem %s3, %s319
        // Predicated region
        $region71: #{_lambda_.7} parent=65 // pred_check
          %p321 = pneg %p100
        $region72: #{_lambda_.7} parent=65 // pred_check_branch
          %323 = sbr.rel (%p321) target = $region74
        $region73: #{_lambda_.7} parent=65 // pred_region
          %s324 = smul.u32 2, %s14
        $region74: #{_lambda_.7} parent=65 // pred_fallthru
          _
      $region66: #{_lambda_.7} parent=5 // pred_fallthru
        _
      %p325 = scmp.le.s32.totalorder 2, %s9
      // Predicated region
      $region75: #{_lambda_.7} parent=5 // pred_check
        %p326 = pneg %p325
      $region76: #{_lambda_.7} parent=5 // pred_check_branch
        %328 = sbr.rel (%p326) target = $region78
      $region77: #{_lambda_.7} parent=5 // pred_region
        %s329 = ssub.s32 %s9, 2
        // Predicated region
        $region79: #{_lambda_.7} parent=77 // pred_check
          %p330 = pneg %p106
        $region80: #{_lambda_.7} parent=77 // pred_check_branch
          %332 = sbr.rel (%p330) target = $region82
        $region81: #{_lambda_.7} parent=77 // pred_region
          %s333 = smul.u32 2, %s15
          %p334 = scmp.lt.s32.totalorder %s333, 3
          %s335 = scalar_select %p334, %s333, 3
          %s336 = smul.addr %s335, 4
          %s337 = scalar_lea.vmem %s3, %s336
        $region82: #{_lambda_.7} parent=77 // pred_fallthru
          _
      $region78: #{_lambda_.7} parent=5 // pred_fallthru
        _
    $region6: #{_lambda_.7} parent=1 // loop_footer
      %s13 = sadd.s32 1, %s9
    $region7: #{_lambda_.7} parent=1 // loop_footer_branch
      %8 = sbr.rel target = $region3
    $region8: #{_lambda_.7} parent=1 // loop_exit
      _

// kernel: _lambda_.8
$region0: #{_lambda_.8}
  #allocation0 [shape = 'u32[]', space=smem, size = 0x4, offset = 0x4, fixed_abs, tag = 'smem constant byte address 0x4 - core index']
  #allocation1 [shape = 'u32[144,128]{1,0:T(1,128)}', space=vmem, size = 0x12000, scoped, tag = 'internal scratch']
  %s0 = inlined_call_operand.vmem [shape: bf16[54,128], index: 0, kind: input, shape index: {}]
  %s1 = inlined_call_operand.vmem [shape: bf16[12,54], index: 1, kind: input, shape index: {}]
  %s2 = inlined_call_operand.vmem [shape: f32[12,1], index: 2, kind: input, shape index: {}]
  %s3 = inlined_call_operand.vmem [shape: bf16[12,128], index: 3, kind: output, shape index: {}]
  %s4 = sld [smem:[#allocation0]]
  $region22: #{_lambda_.8} parent=0
    _
  %s6 = ssub.s32 1, %s4
  %s7 = scalar_select 0, %s6, %s4
  // Predicated region
  $region2: #{_lambda_.8} parent=0 // pred_check
    _
  $region3: #{_lambda_.8} parent=0 // pred_check_branch
    %9 = sbr.rel (0) target = $region5
  $region4: #{_lambda_.8} parent=0 // pred_region
    _
  $region5: #{_lambda_.8} parent=0 // pred_fallthru
    _
  // Predicated region
  $region6: #{_lambda_.8} parent=0 // pred_check
    _
  $region7: #{_lambda_.8} parent=0 // pred_check_branch
    %11 = sbr.rel (0) target = $region9
  $region8: #{_lambda_.8} parent=0 // pred_region
    _
  $region9: #{_lambda_.8} parent=0 // pred_fallthru
    _
  // Predicated region
  $region10: #{_lambda_.8} parent=0 // pred_check
    _
  $region11: #{_lambda_.8} parent=0 // pred_check_branch
    %13 = sbr.rel (0) target = $region13
  $region12: #{_lambda_.8} parent=0 // pred_region
    _
  $region13: #{_lambda_.8} parent=0 // pred_fallthru
    _
  %v15 = vld [vmem:[%s1] sm:$0xf]
  %v16 = vld [vmem:[%s1 + $0x4] sm:$0x3]
  %v17 = vld [vmem:[%s0] sm:$0xf]
  %v18 = vld [vmem:[%s0 + $0x4] sm:$0xf]
  %v19 = vld [vmem:[%s0 + $0x8] sm:$0xf]
  %v20 = vld [vmem:[%s0 + $0xc] sm:$0xf]
  %v21 = vld [vmem:[%s0 + $0x10] sm:$0xf]
  %v22 = vld [vmem:[%s0 + $0x14] sm:$0xf]
  %v23 = vld [vmem:[%s0 + $0x18] sm:$0x7]
  %v24 = vld [vmem:[%s2] sm:$0xff]
  %v25 = vld [vmem:[%s2 + $0x8] sm:$0xf]
  %27 = vset.pattern.permute.xlu0 0
  %28 = vperm.xlu0 %27, %v24
  %v29 = vpop.permute.xlu0 %28
  %32 = vset.pattern.permute.xlu0 0
  %33 = vperm.xlu0 %32, %v25
  %v34 = vpop.permute.xlu0 %33
  %v38 = vunpack.c.l.b16 %v15
  %v39 = vunpack.c.l.b16 %v16
  %v40 = vpack.c.b16 %v39, %v38
  %v48 = vunpack.c.l.b16 %v17
  %v49 = vunpack.c.l.b16 %v18
  %v50 = vunpack.c.l.b16 %v19
  %v51 = vunpack.c.l.b16 %v20
  %v52 = vunpack.c.l.b16 %v21
  %v53 = vunpack.c.l.b16 %v22
  %v54 = vunpack.c.l.b16 %v23
  %v55 = vpack.c.b16 %v49, %v48
  %v56 = vpack.c.b16 %v51, %v50
  %v57 = vpack.c.b16 %v53, %v52
  %v58 = vpack.c.b16 %v54, %v54
  %vm62 = vcmask 441344
  %v64 = vsel %vm62, %v40, 0
  %vm66 = vcmask 1042432
  %v68 = vsel %vm66, %v58, 0
  %70 = vmatprep.subr.bf16.mxu0 0
  %71 = vmatpush1.bf16.msra.mxu0 %v55
  %72 = vmatprep.subr.bf16.mxu0 0
  %73 = vmatpush1.bf16.msra.mxu0 %v56
  %74 = vmatprep.subr.bf16.mxu0 0
  %75 = vmatpush1.bf16.msra.mxu0 %v57
  %76 = vmatprep.subr.bf16.mxu0 0
  %77 = vmatpush1.bf16.msra.mxu0 %v68
  %78 = vmatprep.subr.bf16.mxu0 0
  %79 = vmatpush1.bf16.msra.mxu0 0
  %80 = vmatprep.subr.bf16.mxu0 0
  %81 = vmatpush1.bf16.msra.mxu0 0
  %82 = vmatprep.subr.bf16.mxu0 0
  %83 = vmatpush1.bf16.msra.mxu0 0
  %84 = vmatprep.subr.bf16.mxu0 0
  %85 = vmatpush1.bf16.msra.mxu0 0
  %86 = vmatprep.subr.bf16.mxu0 0
  %87 = vmatpush1.bf16.msra.mxu0 0
  %88 = vmatprep.subr.bf16.mxu0 0
  %89 = vmatpush1.bf16.msra.mxu0 0
  %90 = vmatprep.subr.bf16.mxu0 0
  %91 = vmatpush1.bf16.msra.mxu0 0
  %92 = vmatprep.subr.bf16.mxu0 0
  %93 = vmatpush1.bf16.msra.mxu0 0
  %94 = vmatprep.subr.bf16.mxu0 0
  %95 = vmatpush1.bf16.msra.mxu0 0
  %96 = vmatprep.subr.bf16.mxu0 0
  %97 = vmatpush1.bf16.msra.mxu0 0
  %98 = vmatprep.subr.bf16.mxu0 0
  %99 = vmatpush1.bf16.msra.mxu0 0
  %100 = vmatprep.subr.bf16.mxu0 0
  %101 = vmatpush1.bf16.msra.mxu0 0
  %102 = vmatprep.mubr.bf16.mxu0 0
  %103 = vmatmul.mubr.bf16.gmra.mrb[0].mxu0 %v64
  %v104 = vpop.f32.mrb[0].mxu0
  %v105 = vadd.f32 %v29, %v104
  %v106 = vpop.f32.mrb[0].mxu0
  %v107 = vpop.f32.mrb[0].mxu0
  %v108 = vadd.f32 %v34, %v107
  %v109 = vpop.f32.mrb[0].mxu0
  %110 = vdwg.mxu0
  %v111 = vmax.f32 %v105, 0.0
  %v112 = vmax.f32 %v108, 0.0
  %v113 = vpack.c.bf16 %v112, %v111
  %v115 = vunpack.c.l.b16 %v113
  %v116 = vunpack.c.h.b16 %v113
  %v117 = vpack.c.b16 %v115, %v115
  %v118 = vpack.c.b16 %v116, %v116
  %121 = vst [vmem:[%s3] sm:$0xf] %v117
  %122 = vst [vmem:[%s3 + $0x4] sm:$0x3] %v118
  // Predicated region
  $region14: #{_lambda_.8} parent=0 // pred_check
    _
  $region15: #{_lambda_.8} parent=0 // pred_check_branch
    %124 = sbr.rel (0) target = $region17
  $region16: #{_lambda_.8} parent=0 // pred_region
    _
  $region17: #{_lambda_.8} parent=0 // pred_fallthru
    _
  // Predicated region
  $region18: #{_lambda_.8} parent=0 // pred_check
    _
  $region19: #{_lambda_.8} parent=0 // pred_check_branch
    %126 = sbr.rel (0) target = $region21
  $region20: #{_lambda_.8} parent=0 // pred_region
    _
  $region21: #{_lambda_.8} parent=0 // pred_fallthru
    _

// kernel: _lambda_.9
$region0: #{_lambda_.9}
  #allocation0 [shape = 'u32[]', space=smem, size = 0x4, offset = 0x4, fixed_abs, tag = 'smem constant byte address 0x4 - core index']
  #allocation1 [shape = 'u32[144,128]{1,0:T(1,128)}', space=vmem, size = 0x12000, scoped, tag = 'internal scratch']
  %s0 = inlined_call_operand.vmem [shape: bf16[108,128], index: 0, kind: input, shape index: {}]
  %s1 = inlined_call_operand.vmem [shape: bf16[20,108], index: 1, kind: input, shape index: {}]
  %s2 = inlined_call_operand.vmem [shape: f32[20,1], index: 2, kind: input, shape index: {}]
  %s3 = inlined_call_operand.vmem [shape: bf16[20,128], index: 3, kind: output, shape index: {}]
  %s4 = sld [smem:[#allocation0]]
  $region22: #{_lambda_.9} parent=0
    _
  %s6 = ssub.s32 1, %s4
  %s7 = scalar_select 0, %s6, %s4
  // Predicated region
  $region2: #{_lambda_.9} parent=0 // pred_check
    _
  $region3: #{_lambda_.9} parent=0 // pred_check_branch
    %9 = sbr.rel (0) target = $region5
  $region4: #{_lambda_.9} parent=0 // pred_region
    _
  $region5: #{_lambda_.9} parent=0 // pred_fallthru
    _
  // Predicated region
  $region6: #{_lambda_.9} parent=0 // pred_check
    _
  $region7: #{_lambda_.9} parent=0 // pred_check_branch
    %11 = sbr.rel (0) target = $region9
  $region8: #{_lambda_.9} parent=0 // pred_region
    _
  $region9: #{_lambda_.9} parent=0 // pred_fallthru
    _
  // Predicated region
  $region10: #{_lambda_.9} parent=0 // pred_check
    _
  $region11: #{_lambda_.9} parent=0 // pred_check_branch
    %13 = sbr.rel (0) target = $region13
  $region12: #{_lambda_.9} parent=0 // pred_region
    _
  $region13: #{_lambda_.9} parent=0 // pred_fallthru
    _
  %v15 = vld [vmem:[%s1] sm:$0xf]
  %v16 = vld [vmem:[%s1 + $0x4] sm:$0xf]
  %v17 = vld [vmem:[%s1 + $0x8] sm:$0x3]
  %v18 = vld [vmem:[%s0] sm:$0xf]
  %v19 = vld [vmem:[%s0 + $0x4] sm:$0xf]
  %v20 = vld [vmem:[%s0 + $0x8] sm:$0xf]
  %v21 = vld [vmem:[%s0 + $0xc] sm:$0xf]
  %v22 = vld [vmem:[%s0 + $0x10] sm:$0xf]
  %v23 = vld [vmem:[%s0 + $0x14] sm:$0xf]
  %v24 = vld [vmem:[%s0 + $0x18] sm:$0xf]
  %v25 = vld [vmem:[%s0 + $0x1c] sm:$0xf]
  %v26 = vld [vmem:[%s0 + $0x20] sm:$0xf]
  %v27 = vld [vmem:[%s0 + $0x24] sm:$0xf]
  %v28 = vld [vmem:[%s0 + $0x28] sm:$0xf]
  %v29 = vld [vmem:[%s0 + $0x2c] sm:$0xf]
  %v30 = vld [vmem:[%s0 + $0x30] sm:$0xf]
  %v31 = vld [vmem:[%s0 + $0x34] sm:$0x3]
  %v32 = vld [vmem:[%s2] sm:$0xff]
  %v33 = vld [vmem:[%s2 + $0x8] sm:$0xff]
  %v34 = vld [vmem:[%s2 + $0x10] sm:$0xf]
  %36 = vset.pattern.permute.xlu0 0
  %37 = vperm.xlu0 %36, %v32
  %v38 = vpop.permute.xlu0 %37
  %41 = vset.pattern.permute.xlu0 0
  %42 = vperm.xlu0 %41, %v33
  %v43 = vpop.permute.xlu0 %42
  %46 = vset.pattern.permute.xlu0 0
  %47 = vperm.xlu0 %46, %v34
  %v48 = vpop.permute.xlu0 %47
  %v53 = vunpack.c.l.b16 %v15
  %v54 = vunpack.c.l.b16 %v16
  %v55 = vunpack.c.l.b16 %v17
  %v56 = vpack.c.b16 %v54, %v53
  %v57 = vpack.c.b16 %v55, %v55
  %v72 = vunpack.c.l.b16 %v18
  %v73 = vunpack.c.l.b16 %v19
  %v74 = vunpack.c.l.b16 %v20
  %v75 = vunpack.c.l.b16 %v21
  %v76 = vunpack.c.l.b16 %v22
  %v77 = vunpack.c.l.b16 %v23
  %v78 = vunpack.c.l.b16 %v24
  %v79 = vunpack.c.l.b16 %v25
  %v80 = vunpack.c.l.b16 %v26
  %v81 = vunpack.c.l.b16 %v27
  %v82 = vunpack.c.l.b16 %v28
  %v83 = vunpack.c.l.b16 %v29
  %v84 = vunpack.c.l.b16 %v30
  %v85 = vunpack.c.l.b16 %v31
  %v86 = vpack.c.b16 %v73, %v72
  %v87 = vpack.c.b16 %v75, %v74
  %v88 = vpack.c.b16 %v77, %v76
  %v89 = vpack.c.b16 %v79, %v78
  %v90 = vpack.c.b16 %v81, %v80
  %v91 = vpack.c.b16 %v83, %v82
  %v92 = vpack.c.b16 %v85, %v84
  %vm99 = vcmask 883712
  %v101 = vsel %vm99, %v56, 0
  %v104 = vsel %vm99, %v57, 0
  %vm106 = vcmask 1045504
  %v108 = vsel %vm106, %v92, 0
  %110 = vmatprep.subr.bf16.mxu0 0
  %111 = vmatpush1.bf16.msra.mxu0 %v86
  %112 = vmatprep.subr.bf16.mxu0 0
  %113 = vmatpush1.bf16.msra.mxu0 %v87
  %114 = vmatprep.subr.bf16.mxu0 0
  %115 = vmatpush1.bf16.msra.mxu0 %v88
  %116 = vmatprep.subr.bf16.mxu0 0
  %117 = vmatpush1.bf16.msra.mxu0 %v89
  %118 = vmatprep.subr.bf16.mxu0 0
  %119 = vmatpush1.bf16.msra.mxu0 %v90
  %120 = vmatprep.subr.bf16.mxu0 0
  %121 = vmatpush1.bf16.msra.mxu0 %v91
  %122 = vmatprep.subr.bf16.mxu0 0
  %123 = vmatpush1.bf16.msra.mxu0 %v108
  %124 = vmatprep.subr.bf16.mxu0 0
  %125 = vmatpush1.bf16.msra.mxu0 0
  %126 = vmatprep.subr.bf16.mxu0 0
  %127 = vmatpush1.bf16.msra.mxu0 0
  %128 = vmatprep.subr.bf16.mxu0 0
  %129 = vmatpush1.bf16.msra.mxu0 0
  %130 = vmatprep.subr.bf16.mxu0 0
  %131 = vmatpush1.bf16.msra.mxu0 0
  %132 = vmatprep.subr.bf16.mxu0 0
  %133 = vmatpush1.bf16.msra.mxu0 0
  %134 = vmatprep.subr.bf16.mxu0 0
  %135 = vmatpush1.bf16.msra.mxu0 0
  %136 = vmatprep.subr.bf16.mxu0 0
  %137 = vmatpush1.bf16.msra.mxu0 0
  %138 = vmatprep.subr.bf16.mxu0 0
  %139 = vmatpush1.bf16.msra.mxu0 0
  %140 = vmatprep.subr.bf16.mxu0 0
  %141 = vmatpush1.bf16.msra.mxu0 0
  %142 = vmatprep.mubr.bf16.mxu0 0
  %143 = vmatmul.mubr.bf16.gmra.mrb[0].mxu0 %v101
  %v144 = vpop.f32.mrb[0].mxu0
  %v145 = vadd.f32 %v38, %v144
  %v146 = vpop.f32.mrb[0].mxu0
  %v147 = vpop.f32.mrb[0].mxu0
  %v148 = vadd.f32 %v43, %v147
  %v149 = vpop.f32.mrb[0].mxu0
  %150 = vmatprep.mubr.bf16.mxu0 0
  %151 = vmatmul.mubr.bf16.gmra.mrb[0].mxu0 %v104
  %v152 = vpop.f32.mrb[0].mxu0
  %v153 = vadd.f32 %v48, %v152
  %v154 = vpop.f32.mrb[0].mxu0
  %v155 = vpop.f32.mrb[0].mxu0
  %v156 = vpop.f32.mrb[0].mxu0
  %157 = vdwg.mxu0
  %v158 = vmax.f32 %v145, 0.0
  %v159 = vmax.f32 %v148, 0.0
  %v160 = vmax.f32 %v153, 0.0
  %v161 = vpack.c.bf16 %v159, %v158
  %v162 = vpack.c.bf16 %v160, %v160
  %v165 = vunpack.c.l.b16 %v161
  %v166 = vunpack.c.h.b16 %v161
  %v167 = vunpack.c.l.b16 %v162
  %v168 = vpack.c.b16 %v165, %v165
  %v169 = vpack.c.b16 %v166, %v166
  %v170 = vpack.c.b16 %v167, %v167
  %174 = vst [vmem:[%s3] sm:$0xf] %v168
  %175 = vst [vmem:[%s3 + $0x4] sm:$0xf] %v169
  %176 = vst [vmem:[%s3 + $0x8] sm:$0x3] %v170
  // Predicated region
  $region14: #{_lambda_.9} parent=0 // pred_check
    _
  $region15: #{_lambda_.9} parent=0 // pred_check_branch
    %178 = sbr.rel (0) target = $region17
  $region16: #{_lambda_.9} parent=0 // pred_region
    _
  $region17: #{_lambda_.9} parent=0 // pred_fallthru
    _
  // Predicated region
  $region18: #{_lambda_.9} parent=0 // pred_check
    _
  $region19: #{_lambda_.9} parent=0 // pred_check_branch
    %180 = sbr.rel (0) target = $region21
  $region20: #{_lambda_.9} parent=0 // pred_region
    _
  $region21: #{_lambda_.9} parent=0 // pred_fallthru
    _

// kernel: _lambda_.10
$region0: #{_lambda_.10}
  #allocation0 [shape = 'u32[]', space=smem, size = 0x4, offset = 0x4, fixed_abs, tag = 'smem constant byte address 0x4 - core index']
  #allocation1 [shape = 'u32[144,128]{1,0:T(1,128)}', space=vmem, size = 0x12000, scoped, tag = 'internal scratch']
  %s0 = inlined_call_operand.vmem [shape: bf16[180,128], index: 0, kind: input, shape index: {}]
  %s1 = inlined_call_operand.vmem [shape: bf16[40,180], index: 1, kind: input, shape index: {}]
  %s2 = inlined_call_operand.vmem [shape: f32[40,1], index: 2, kind: input, shape index: {}]
  %s3 = inlined_call_operand.vmem [shape: bf16[40,128], index: 3, kind: output, shape index: {}]
  %s4 = sld [smem:[#allocation0]]
  $region22: #{_lambda_.10} parent=0
    _
  %s6 = ssub.s32 1, %s4
  %s7 = scalar_select 0, %s6, %s4
  // Predicated region
  $region2: #{_lambda_.10} parent=0 // pred_check
    _
  $region3: #{_lambda_.10} parent=0 // pred_check_branch
    %9 = sbr.rel (0) target = $region5
  $region4: #{_lambda_.10} parent=0 // pred_region
    _
  $region5: #{_lambda_.10} parent=0 // pred_fallthru
    _
  // Predicated region
  $region6: #{_lambda_.10} parent=0 // pred_check
    _
  $region7: #{_lambda_.10} parent=0 // pred_check_branch
    %11 = sbr.rel (0) target = $region9
  $region8: #{_lambda_.10} parent=0 // pred_region
    _
  $region9: #{_lambda_.10} parent=0 // pred_fallthru
    _
  // Predicated region
  $region10: #{_lambda_.10} parent=0 // pred_check
    _
  $region11: #{_lambda_.10} parent=0 // pred_check_branch
    %13 = sbr.rel (0) target = $region13
  $region12: #{_lambda_.10} parent=0 // pred_region
    _
  $region13: #{_lambda_.10} parent=0 // pred_fallthru
    _
  %v15 = vld [vmem:[%s1] sm:$0xff]
  %v16 = vld [vmem:[%s1 + $0x8] sm:$0xff]
  %v17 = vld [vmem:[%s1 + $0x10] sm:$0xff]
  %v18 = vld [vmem:[%s1 + $0x18] sm:$0xff]
  %v19 = vld [vmem:[%s1 + $0x20] sm:$0xff]
  %v20 = vld [vmem:[%s0] sm:$0xf]
  %v21 = vld [vmem:[%s0 + $0x4] sm:$0xf]
  %v22 = vld [vmem:[%s0 + $0x8] sm:$0xf]
  %v23 = vld [vmem:[%s0 + $0xc] sm:$0xf]
  %v24 = vld [vmem:[%s0 + $0x10] sm:$0xf]
  %v25 = vld [vmem:[%s0 + $0x14] sm:$0xf]
  %v26 = vld [vmem:[%s0 + $0x18] sm:$0xf]
  %v27 = vld [vmem:[%s0 + $0x1c] sm:$0xf]
  %v28 = vld [vmem:[%s0 + $0x20] sm:$0xf]
  %v29 = vld [vmem:[%s0 + $0x24] sm:$0xf]
  %v30 = vld [vmem:[%s0 + $0x28] sm:$0xf]
  %v31 = vld [vmem:[%s0 + $0x2c] sm:$0xf]
  %v32 = vld [vmem:[%s0 + $0x30] sm:$0xf]
  %v33 = vld [vmem:[%s0 + $0x34] sm:$0xf]
  %v34 = vld [vmem:[%s0 + $0x38] sm:$0xf]
  %v35 = vld [vmem:[%s0 + $0x3c] sm:$0xf]
  %v36 = vld [vmem:[%s0 + $0x40] sm:$0xf]
  %v37 = vld [vmem:[%s0 + $0x44] sm:$0xf]
  %v38 = vld [vmem:[%s0 + $0x48] sm:$0xf]
  %v39 = vld [vmem:[%s0 + $0x4c] sm:$0xf]
  %v40 = vld [vmem:[%s0 + $0x50] sm:$0xf]
  %v41 = vld [vmem:[%s0 + $0x54] sm:$0xf]
  %v42 = vld [vmem:[%s0 + $0x58] sm:$0x3]
  %v43 = vld [vmem:[%s2] sm:$0xff]
  %v44 = vld [vmem:[%s2 + $0x8] sm:$0xff]
  %v45 = vld [vmem:[%s2 + $0x10] sm:$0xff]
  %v46 = vld [vmem:[%s2 + $0x18] sm:$0xff]
  %v47 = vld [vmem:[%s2 + $0x20] sm:$0xff]
  %49 = vset.pattern.permute.xlu0 0
  %50 = vperm.xlu0 %49, %v43
  %v51 = vpop.permute.xlu0 %50
  %54 = vset.pattern.permute.xlu0 0
  %55 = vperm.xlu0 %54, %v44
  %v56 = vpop.permute.xlu0 %55
  %59 = vset.pattern.permute.xlu0 0
  %60 = vperm.xlu0 %59, %v45
  %v61 = vpop.permute.xlu0 %60
  %64 = vset.pattern.permute.xlu0 0
  %65 = vperm.xlu0 %64, %v46
  %v66 = vpop.permute.xlu0 %65
  %69 = vset.pattern.permute.xlu0 0
  %70 = vperm.xlu0 %69, %v47
  %v71 = vpop.permute.xlu0 %70
  %v78 = vunpack.c.l.b16 %v15
  %v79 = vunpack.c.h.b16 %v15
  %v80 = vunpack.c.l.b16 %v16
  %v81 = vunpack.c.h.b16 %v16
  %v82 = vunpack.c.l.b16 %v17
  %v83 = vunpack.c.h.b16 %v17
  %v84 = vunpack.c.l.b16 %v18
  %v85 = vunpack.c.h.b16 %v18
  %v86 = vunpack.c.l.b16 %v19
  %v87 = vunpack.c.h.b16 %v19
  %v88 = vpack.c.b16 %v80, %v78
  %v89 = vpack.c.b16 %v81, %v79
  %v90 = vpack.c.b16 %v84, %v82
  %v91 = vpack.c.b16 %v85, %v83
  %v92 = vpack.c.b16 %v86, %v86
  %v93 = vpack.c.b16 %v87, %v87
  %v120 = vunpack.c.l.b16 %v20
  %v121 = vunpack.c.l.b16 %v21
  %v122 = vunpack.c.l.b16 %v22
  %v123 = vunpack.c.l.b16 %v23
  %v124 = vunpack.c.l.b16 %v24
  %v125 = vunpack.c.l.b16 %v25
  %v126 = vunpack.c.l.b16 %v26
  %v127 = vunpack.c.l.b16 %v27
  %v128 = vunpack.c.l.b16 %v28
  %v129 = vunpack.c.l.b16 %v29
  %v130 = vunpack.c.l.b16 %v30
  %v131 = vunpack.c.l.b16 %v31
  %v132 = vunpack.c.l.b16 %v32
  %v133 = vunpack.c.l.b16 %v33
  %v134 = vunpack.c.l.b16 %v34
  %v135 = vunpack.c.l.b16 %v35
  %v136 = vunpack.c.l.b16 %v36
  %v137 = vunpack.c.l.b16 %v37
  %v138 = vunpack.c.l.b16 %v38
  %v139 = vunpack.c.l.b16 %v39
  %v140 = vunpack.c.l.b16 %v40
  %v141 = vunpack.c.l.b16 %v41
  %v142 = vunpack.c.l.b16 %v42
  %v143 = vpack.c.b16 %v121, %v120
  %v144 = vpack.c.b16 %v123, %v122
  %v145 = vpack.c.b16 %v125, %v124
  %v146 = vpack.c.b16 %v127, %v126
  %v147 = vpack.c.b16 %v129, %v128
  %v148 = vpack.c.b16 %v131, %v130
  %v149 = vpack.c.b16 %v133, %v132
  %v150 = vpack.c.b16 %v135, %v134
  %v151 = vpack.c.b16 %v137, %v136
  %v152 = vpack.c.b16 %v139, %v138
  %v153 = vpack.c.b16 %v141, %v140
  %v154 = vpack.c.b16 %v142, %v142
  %vm166 = vcmask 424960
  %v168 = vsel %vm166, %v89, 0
  %v171 = vsel %vm166, %v91, 0
  %v174 = vsel %vm166, %v93, 0
  %vm176 = vcmask 1041408
  %v178 = vsel %vm176, %v154, 0
  %180 = vmatprep.subr.bf16.mxu0 0
  %181 = vmatpush1.bf16.msra.mxu0 %v143
  %182 = vmatprep.subr.bf16.mxu0 0
  %183 = vmatpush1.bf16.msra.mxu0 %v144
  %184 = vmatprep.subr.bf16.mxu0 0
  %185 = vmatpush1.bf16.msra.mxu0 %v145
  %186 = vmatprep.subr.bf16.mxu0 0
  %187 = vmatpush1.bf16.msra.mxu0 %v146
  %188 = vmatprep.subr.bf16.mxu0 0
  %189 = vmatpush1.bf16.msra.mxu0 %v147
  %190 = vmatprep.subr.bf16.mxu0 0
  %191 = vmatpush1.bf16.msra.mxu0 %v148
  %192 = vmatprep.subr.bf16.mxu0 0
  %193 = vmatpush1.bf16.msra.mxu0 %v149
  %194 = vmatprep.subr.bf16.mxu0 0
  %195 = vmatpush1.bf16.msra.mxu0 %v150
  %196 = vmatprep.subr.bf16.mxu0 0
  %197 = vmatpush1.bf16.msra.mxu0 %v151
  %198 = vmatprep.subr.bf16.mxu0 0
  %199 = vmatpush1.bf16.msra.mxu0 %v152
  %200 = vmatprep.subr.bf16.mxu0 0
  %201 = vmatpush1.bf16.msra.mxu0 %v153
  %202 = vmatprep.subr.bf16.mxu0 0
  %203 = vmatpush1.bf16.msra.mxu0 %v178
  %204 = vmatprep.subr.bf16.mxu0 0
  %205 = vmatpush1.bf16.msra.mxu0 0
  %206 = vmatprep.subr.bf16.mxu0 0
  %207 = vmatpush1.bf16.msra.mxu0 0
  %208 = vmatprep.subr.bf16.mxu0 0
  %209 = vmatpush1.bf16.msra.mxu0 0
  %210 = vmatprep.subr.bf16.mxu0 0
  %211 = vmatpush1.bf16.msra.mxu0 0
  %212 = vmatprep.mubr.bf16.mxu0 %v168
  %213 = vmatmul.mubr.bf16.gmra.mrb[0].mxu0 %v88
  %v214 = vpop.f32.mrb[0].mxu0
  %v215 = vadd.f32 %v51, %v214
  %v216 = vpop.f32.mrb[0].mxu0
  %v217 = vpop.f32.mrb[0].mxu0
  %v218 = vadd.f32 %v56, %v217
  %v219 = vpop.f32.mrb[0].mxu0
  %220 = vmatprep.mubr.bf16.mxu0 %v171
  %221 = vmatmul.mubr.bf16.gmra.mrb[0].mxu0 %v90
  %v222 = vpop.f32.mrb[0].mxu0
  %v223 = vadd.f32 %v61, %v222
  %v224 = vpop.f32.mrb[0].mxu0
  %v225 = vpop.f32.mrb[0].mxu0
  %v226 = vadd.f32 %v66, %v225
  %v227 = vpop.f32.mrb[0].mxu0
  %228 = vmatprep.mubr.bf16.mxu0 %v174
  %229 = vmatmul.mubr.bf16.gmra.mrb[0].mxu0 %v92
  %v230 = vpop.f32.mrb[0].mxu0
  %v231 = vadd.f32 %v71, %v230
  %v232 = vpop.f32.mrb[0].mxu0
  %v233 = vpop.f32.mrb[0].mxu0
  %v234 = vpop.f32.mrb[0].mxu0
  %235 = vdwg.mxu0
  %v236 = vmax.f32 %v215, 0.0
  %v237 = vmax.f32 %v218, 0.0
  %v238 = vmax.f32 %v223, 0.0
  %v239 = vmax.f32 %v226, 0.0
  %v240 = vmax.f32 %v231, 0.0
  %v241 = vpack.c.bf16 %v237, %v236
  %v242 = vpack.c.bf16 %v239, %v238
  %v243 = vpack.c.bf16 %v240, %v240
  %v247 = vunpack.c.l.b16 %v241
  %v248 = vunpack.c.h.b16 %v241
  %v249 = vunpack.c.l.b16 %v242
  %v250 = vunpack.c.h.b16 %v242
  %v251 = vunpack.c.l.b16 %v243
  %v252 = vpack.c.b16 %v247, %v247
  %v253 = vpack.c.b16 %v248, %v248
  %v254 = vpack.c.b16 %v249, %v249
  %v255 = vpack.c.b16 %v250, %v250
  %v256 = vpack.c.b16 %v251, %v251
  %262 = vst [vmem:[%s3] sm:$0xf] %v252
  %263 = vst [vmem:[%s3 + $0x4] sm:$0xf] %v253
  %264 = vst [vmem:[%s3 + $0x8] sm:$0xf] %v254
  %265 = vst [vmem:[%s3 + $0xc] sm:$0xf] %v255
  %266 = vst [vmem:[%s3 + $0x10] sm:$0xf] %v256
  // Predicated region
  $region14: #{_lambda_.10} parent=0 // pred_check
    _
  $region15: #{_lambda_.10} parent=0 // pred_check_branch
    %268 = sbr.rel (0) target = $region17
  $region16: #{_lambda_.10} parent=0 // pred_region
    _
  $region17: #{_lambda_.10} parent=0 // pred_fallthru
    _
  // Predicated region
  $region18: #{_lambda_.10} parent=0 // pred_check
    _
  $region19: #{_lambda_.10} parent=0 // pred_check_branch
    %270 = sbr.rel (0) target = $region21
  $region20: #{_lambda_.10} parent=0 // pred_region
    _
  $region21: #{_lambda_.10} parent=0 // pred_fallthru
    _

// kernel: _lambda_.11
$region0: #{_lambda_.11}
  #allocation0 [shape = 'u32[]', space=smem, size = 0x4, offset = 0x4, fixed_abs, tag = 'smem constant byte address 0x4 - core index']
  #allocation1 [shape = 'u32[144,128]{1,0:T(1,128)}', space=vmem, size = 0x12000, scoped, tag = 'internal scratch']
  %s0 = inlined_call_operand.vmem [shape: bf16[360,128], index: 0, kind: input, shape index: {}]
  %s1 = inlined_call_operand.vmem [shape: bf16[20,360], index: 1, kind: input, shape index: {}]
  %s2 = inlined_call_operand.vmem [shape: f32[20,1], index: 2, kind: input, shape index: {}]
  %s3 = inlined_call_operand.vmem [shape: bf16[20,128], index: 3, kind: input, shape index: {}]
  %s4 = inlined_call_operand.vmem [shape: bf16[20,20], index: 4, kind: input, shape index: {}]
  %s5 = inlined_call_operand.vmem [shape: f32[20,1], index: 5, kind: input, shape index: {}]
  %s6 = inlined_call_operand.vmem [shape: bf16[20,128], index: 6, kind: output, shape index: {}]
  %s7 = sld [smem:[#allocation0]]
  $region34: #{_lambda_.11} parent=0
    _
  %s9 = ssub.s32 1, %s7
  %s10 = scalar_select 0, %s9, %s7
  // Predicated region
  $region2: #{_lambda_.11} parent=0 // pred_check
    _
  $region3: #{_lambda_.11} parent=0 // pred_check_branch
    %12 = sbr.rel (0) target = $region5
  $region4: #{_lambda_.11} parent=0 // pred_region
    _
  $region5: #{_lambda_.11} parent=0 // pred_fallthru
    _
  // Predicated region
  $region6: #{_lambda_.11} parent=0 // pred_check
    _
  $region7: #{_lambda_.11} parent=0 // pred_check_branch
    %14 = sbr.rel (0) target = $region9
  $region8: #{_lambda_.11} parent=0 // pred_region
    _
  $region9: #{_lambda_.11} parent=0 // pred_fallthru
    _
  // Predicated region
  $region10: #{_lambda_.11} parent=0 // pred_check
    _
  $region11: #{_lambda_.11} parent=0 // pred_check_branch
    %16 = sbr.rel (0) target = $region13
  $region12: #{_lambda_.11} parent=0 // pred_region
    _
  $region13: #{_lambda_.11} parent=0 // pred_fallthru
    _
  // Predicated region
  $region14: #{_lambda_.11} parent=0 // pred_check
    _
  $region15: #{_lambda_.11} parent=0 // pred_check_branch
    %18 = sbr.rel (0) target = $region17
  $region16: #{_lambda_.11} parent=0 // pred_region
    _
  $region17: #{_lambda_.11} parent=0 // pred_fallthru
    _
  // Predicated region
  $region18: #{_lambda_.11} parent=0 // pred_check
    _
  $region19: #{_lambda_.11} parent=0 // pred_check_branch
    %20 = sbr.rel (0) target = $region21
  $region20: #{_lambda_.11} parent=0 // pred_region
    _
  $region21: #{_lambda_.11} parent=0 // pred_fallthru
    _
  // Predicated region
  $region22: #{_lambda_.11} parent=0 // pred_check
    _
  $region23: #{_lambda_.11} parent=0 // pred_check_branch
    %22 = sbr.rel (0) target = $region25
  $region24: #{_lambda_.11} parent=0 // pred_region
    _
  $region25: #{_lambda_.11} parent=0 // pred_fallthru
    _
  %v24 = vld [vmem:[%s1] sm:$0xff]
  %v25 = vld [vmem:[%s1 + $0x8] sm:$0xf]
  %v26 = vld [vmem:[%s1 + $0xc] sm:$0xff]
  %v27 = vld [vmem:[%s1 + $0x14] sm:$0xf]
  %v28 = vld [vmem:[%s1 + $0x18] sm:$0x33]
  %v29 = vld [vmem:[%s1 + $0x20] sm:$0x3]
  %v30 = vld [vmem:[%s0] sm:$0xf]
  %v31 = vld [vmem:[%s0 + $0x4] sm:$0xf]
  %v32 = vld [vmem:[%s0 + $0x8] sm:$0xf]
  %v33 = vld [vmem:[%s0 + $0xc] sm:$0xf]
  %v34 = vld [vmem:[%s0 + $0x10] sm:$0xf]
  %v35 = vld [vmem:[%s0 + $0x14] sm:$0xf]
  %v36 = vld [vmem:[%s0 + $0x18] sm:$0xf]
  %v37 = vld [vmem:[%s0 + $0x1c] sm:$0xf]
  %v38 = vld [vmem:[%s0 + $0x20] sm:$0xf]
  %v39 = vld [vmem:[%s0 + $0x24] sm:$0xf]
  %v40 = vld [vmem:[%s0 + $0x28] sm:$0xf]
  %v41 = vld [vmem:[%s0 + $0x2c] sm:$0xf]
  %v42 = vld [vmem:[%s0 + $0x30] sm:$0xf]
  %v43 = vld [vmem:[%s0 + $0x34] sm:$0xf]
  %v44 = vld [vmem:[%s0 + $0x38] sm:$0xf]
  %v45 = vld [vmem:[%s0 + $0x3c] sm:$0xf]
  %v46 = vld [vmem:[%s0 + $0x40] sm:$0xf]
  %v47 = vld [vmem:[%s0 + $0x44] sm:$0xf]
  %v48 = vld [vmem:[%s0 + $0x48] sm:$0xf]
  %v49 = vld [vmem:[%s0 + $0x4c] sm:$0xf]
  %v50 = vld [vmem:[%s0 + $0x50] sm:$0xf]
  %v51 = vld [vmem:[%s0 + $0x54] sm:$0xf]
  %v52 = vld [vmem:[%s0 + $0x58] sm:$0xf]
  %v53 = vld [vmem:[%s0 + $0x5c] sm:$0xf]
  %v54 = vld [vmem:[%s0 + $0x60] sm:$0xf]
  %v55 = vld [vmem:[%s0 + $0x64] sm:$0xf]
  %v56 = vld [vmem:[%s0 + $0x68] sm:$0xf]
  %v57 = vld [vmem:[%s0 + $0x6c] sm:$0xf]
  %v58 = vld [vmem:[%s0 + $0x70] sm:$0xf]
  %v59 = vld [vmem:[%s0 + $0x74] sm:$0xf]
  %v60 = vld [vmem:[%s0 + $0x78] sm:$0xf]
  %v61 = vld [vmem:[%s0 + $0x7c] sm:$0xf]
  %v62 = vld [vmem:[%s0 + $0x80] sm:$0xf]
  %v63 = vld [vmem:[%s0 + $0x84] sm:$0xf]
  %v64 = vld [vmem:[%s0 + $0x88] sm:$0xf]
  %v65 = vld [vmem:[%s0 + $0x8c] sm:$0xf]
  %v66 = vld [vmem:[%s0 + $0x90] sm:$0xf]
  %v67 = vld [vmem:[%s0 + $0x94] sm:$0xf]
  %v68 = vld [vmem:[%s0 + $0x98] sm:$0xf]
  %v69 = vld [vmem:[%s0 + $0x9c] sm:$0xf]
  %v70 = vld [vmem:[%s0 + $0xa0] sm:$0xf]
  %v71 = vld [vmem:[%s0 + $0xa4] sm:$0xf]
  %v72 = vld [vmem:[%s0 + $0xa8] sm:$0xf]
  %v73 = vld [vmem:[%s0 + $0xac] sm:$0xf]
  %v74 = vld [vmem:[%s0 + $0xb0] sm:$0xf]
  %v75 = vld [vmem:[%s2] sm:$0xff]
  %v76 = vld [vmem:[%s2 + $0x8] sm:$0xff]
  %v77 = vld [vmem:[%s2 + $0x10] sm:$0xf]
  %79 = vset.pattern.permute.xlu0 0
  %80 = vperm.xlu0 %79, %v75
  %v81 = vpop.permute.xlu0 %80
  %84 = vset.pattern.permute.xlu0 0
  %85 = vperm.xlu0 %84, %v76
  %v86 = vpop.permute.xlu0 %85
  %89 = vset.pattern.permute.xlu0 0
  %90 = vperm.xlu0 %89, %v77
  %v91 = vpop.permute.xlu0 %90
  %v99 = vunpack.c.l.b16 %v24
  %v100 = vunpack.c.h.b16 %v24
  %v101 = vunpack.c.l.b16 %v25
  %v102 = vunpack.c.l.b16 %v26
  %v103 = vunpack.c.h.b16 %v26
  %v104 = vunpack.c.l.b16 %v27
  %v105 = vunpack.c.l.b16 %v28
  %v106 = vunpack.c.h.b16 %v28
  %v107 = vunpack.c.l.b16 %v29
  %v108 = vpack.c.b16 %v102, %v99
  %v109 = vpack.c.b16 %v103, %v100
  %v110 = vpack.c.b16 %v104, %v101
  %v111 = vpack.c.b16 %v105, %v105
  %v112 = vpack.c.b16 %v106, %v106
  %v113 = vpack.c.b16 %v107, %v107
  %v163 = vunpack.c.l.b16 %v30
  %v164 = vunpack.c.l.b16 %v31
  %v165 = vunpack.c.l.b16 %v32
  %v166 = vunpack.c.l.b16 %v33
  %v167 = vunpack.c.l.b16 %v34
  %v168 = vunpack.c.l.b16 %v35
  %v169 = vunpack.c.l.b16 %v36
  %v170 = vunpack.c.l.b16 %v37
  %v171 = vunpack.c.l.b16 %v38
  %v172 = vunpack.c.l.b16 %v39
  %v173 = vunpack.c.l.b16 %v40
  %v174 = vunpack.c.l.b16 %v41
  %v175 = vunpack.c.l.b16 %v42
  %v176 = vunpack.c.l.b16 %v43
  %v177 = vunpack.c.l.b16 %v44
  %v178 = vunpack.c.l.b16 %v45
  %v179 = vunpack.c.l.b16 %v46
  %v180 = vunpack.c.l.b16 %v47
  %v181 = vunpack.c.l.b16 %v48
  %v182 = vunpack.c.l.b16 %v49
  %v183 = vunpack.c.l.b16 %v50
  %v184 = vunpack.c.l.b16 %v51
  %v185 = vunpack.c.l.b16 %v52
  %v186 = vunpack.c.l.b16 %v53
  %v187 = vunpack.c.l.b16 %v54
  %v188 = vunpack.c.l.b16 %v55
  %v189 = vunpack.c.l.b16 %v56
  %v190 = vunpack.c.l.b16 %v57
  %v191 = vunpack.c.l.b16 %v58
  %v192 = vunpack.c.l.b16 %v59
  %v193 = vunpack.c.l.b16 %v60
  %v194 = vunpack.c.l.b16 %v61
  %v195 = vunpack.c.l.b16 %v62
  %v196 = vunpack.c.l.b16 %v63
  %v197 = vunpack.c.l.b16 %v64
  %v198 = vunpack.c.l.b16 %v65
  %v199 = vunpack.c.l.b16 %v66
  %v200 = vunpack.c.l.b16 %v67
  %v201 = vunpack.c.l.b16 %v68
  %v202 = vunpack.c.l.b16 %v69
  %v203 = vunpack.c.l.b16 %v70
  %v204 = vunpack.c.l.b16 %v71
  %v205 = vunpack.c.l.b16 %v72
  %v206 = vunpack.c.l.b16 %v73
  %v207 = vunpack.c.l.b16 %v74
  %v208 = vpack.c.b16 %v164, %v163
  %v209 = vpack.c.b16 %v166, %v165
  %v210 = vpack.c.b16 %v168, %v167
  %v211 = vpack.c.b16 %v170, %v169
  %v212 = vpack.c.b16 %v172, %v171
  %v213 = vpack.c.b16 %v174, %v173
  %v214 = vpack.c.b16 %v176, %v175
  %v215 = vpack.c.b16 %v178, %v177
  %v216 = vpack.c.b16 %v180, %v179
  %v217 = vpack.c.b16 %v182, %v181
  %v218 = vpack.c.b16 %v184, %v183
  %v219 = vpack.c.b16 %v186, %v185
  %v220 = vpack.c.b16 %v188, %v187
  %v221 = vpack.c.b16 %v190, %v189
  %v222 = vpack.c.b16 %v192, %v191
  %v223 = vpack.c.b16 %v194, %v193
  %v224 = vpack.c.b16 %v196, %v195
  %v225 = vpack.c.b16 %v198, %v197
  %v226 = vpack.c.b16 %v200, %v199
  %v227 = vpack.c.b16 %v202, %v201
  %v228 = vpack.c.b16 %v204, %v203
  %v229 = vpack.c.b16 %v206, %v205
  %v230 = vpack.c.b16 %v207, %v207
  %vm253 = vcmask 850944
  %v255 = vsel %vm253, %v110, 0
  %v258 = vsel %vm253, %v113, 0
  %vm260 = vcmask 1043456
  %v262 = vsel %vm260, %v230, 0
  %264 = vmatprep.subr.bf16.mxu0 0
  %265 = vmatpush1.bf16.msra.mxu0 %v208
  %266 = vmatprep.subr.bf16.mxu0 0
  %267 = vmatpush1.bf16.msra.mxu0 %v209
  %268 = vmatprep.subr.bf16.mxu0 0
  %269 = vmatpush1.bf16.msra.mxu0 %v210
  %270 = vmatprep.subr.bf16.mxu0 0
  %271 = vmatpush1.bf16.msra.mxu0 %v211
  %272 = vmatprep.subr.bf16.mxu0 0
  %273 = vmatpush1.bf16.msra.mxu0 %v212
  %274 = vmatprep.subr.bf16.mxu0 0
  %275 = vmatpush1.bf16.msra.mxu0 %v213
  %276 = vmatprep.subr.bf16.mxu0 0
  %277 = vmatpush1.bf16.msra.mxu0 %v214
  %278 = vmatprep.subr.bf16.mxu0 0
  %279 = vmatpush1.bf16.msra.mxu0 %v215
  %280 = vmatprep.subr.bf16.mxu0 0
  %281 = vmatpush1.bf16.msra.mxu0 %v216
  %282 = vmatprep.subr.bf16.mxu0 0
  %283 = vmatpush1.bf16.msra.mxu0 %v217
  %284 = vmatprep.subr.bf16.mxu0 0
  %285 = vmatpush1.bf16.msra.mxu0 %v218
  %286 = vmatprep.subr.bf16.mxu0 0
  %287 = vmatpush1.bf16.msra.mxu0 %v219
  %288 = vmatprep.subr.bf16.mxu0 0
  %289 = vmatpush1.bf16.msra.mxu0 %v220
  %290 = vmatprep.subr.bf16.mxu0 0
  %291 = vmatpush1.bf16.msra.mxu0 %v221
  %292 = vmatprep.subr.bf16.mxu0 0
  %293 = vmatpush1.bf16.msra.mxu0 %v222
  %294 = vmatprep.subr.bf16.mxu0 0
  %295 = vmatpush1.bf16.msra.mxu0 %v223
  %296 = vmatprep.mubr.bf16.mxu0 %v109
  %297 = vmatmul.mubr.bf16.gmra.mrb[0].mxu0 %v108
  %v298 = vpop.f32.mrb[0].mxu0
  %v299 = vadd.f32 %v81, %v298
  %v300 = vpop.f32.mrb[0].mxu0
  %v301 = vpop.f32.mrb[0].mxu0
  %v302 = vadd.f32 %v86, %v301
  %v303 = vpop.f32.mrb[0].mxu0
  %304 = vmatprep.mubr.bf16.mxu0 %v112
  %305 = vmatmul.mubr.bf16.gmra.mrb[0].mxu0 %v111
  %v306 = vpop.f32.mrb[0].mxu0
  %v307 = vadd.f32 %v91, %v306
  %v308 = vpop.f32.mrb[0].mxu0
  %v309 = vpop.f32.mrb[0].mxu0
  %v310 = vpop.f32.mrb[0].mxu0
  %311 = vdwg.mxu0
  %312 = vmatprep.subr.bf16.mxu0 0
  %313 = vmatpush1.bf16.msra.mxu0 %v224
  %314 = vmatprep.subr.bf16.mxu0 0
  %315 = vmatpush1.bf16.msra.mxu0 %v225
  %316 = vmatprep.subr.bf16.mxu0 0
  %317 = vmatpush1.bf16.msra.mxu0 %v226
  %318 = vmatprep.subr.bf16.mxu0 0
  %319 = vmatpush1.bf16.msra.mxu0 %v227
  %320 = vmatprep.subr.bf16.mxu0 0
  %321 = vmatpush1.bf16.msra.mxu0 %v228
  %322 = vmatprep.subr.bf16.mxu0 0
  %323 = vmatpush1.bf16.msra.mxu0 %v229
  %324 = vmatprep.subr.bf16.mxu0 0
  %325 = vmatpush1.bf16.msra.mxu0 %v262
  %326 = vmatprep.subr.bf16.mxu0 0
  %327 = vmatpush1.bf16.msra.mxu0 0
  %328 = vmatprep.subr.bf16.mxu0 0
  %329 = vmatpush1.bf16.msra.mxu0 0
  %330 = vmatprep.subr.bf16.mxu0 0
  %331 = vmatpush1.bf16.msra.mxu0 0
  %332 = vmatprep.subr.bf16.mxu0 0
  %333 = vmatpush1.bf16.msra.mxu0 0
  %334 = vmatprep.subr.bf16.mxu0 0
  %335 = vmatpush1.bf16.msra.mxu0 0
  %336 = vmatprep.subr.bf16.mxu0 0
  %337 = vmatpush1.bf16.msra.mxu0 0
  %338 = vmatprep.subr.bf16.mxu0 0
  %339 = vmatpush1.bf16.msra.mxu0 0
  %340 = vmatprep.subr.bf16.mxu0 0
  %341 = vmatpush1.bf16.msra.mxu0 0
  %342 = vmatprep.subr.bf16.mxu0 0
  %343 = vmatpush1.bf16.msra.mxu0 0
  %344 = vmatprep.mubr.bf16.mxu0 0
  %345 = vmatmul.mubr.bf16.gmra.mrb[0].mxu0 %v255
  %v346 = vpop.f32.mrb[0].mxu0
  %v347 = vadd.f32 %v299, %v346
  %v348 = vpop.f32.mrb[0].mxu0
  %v349 = vpop.f32.mrb[0].mxu0
  %v350 = vadd.f32 %v302, %v349
  %v351 = vpop.f32.mrb[0].mxu0
  %352 = vmatprep.mubr.bf16.mxu0 0
  %353 = vmatmul.mubr.bf16.gmra.mrb[0].mxu0 %v258
  %v354 = vpop.f32.mrb[0].mxu0
  %v355 = vadd.f32 %v307, %v354
  %v356 = vpop.f32.mrb[0].mxu0
  %v357 = vpop.f32.mrb[0].mxu0
  %v358 = vpop.f32.mrb[0].mxu0
  %359 = vdwg.mxu0
  %v360 = vld [vmem:[%s4] sm:$0xf]
  %v361 = vld [vmem:[%s4 + $0x4] sm:$0xf]
  %v362 = vld [vmem:[%s4 + $0x8] sm:$0x3]
  %v363 = vld [vmem:[%s3] sm:$0xf]
  %v364 = vld [vmem:[%s3 + $0x4] sm:$0xf]
  %v365 = vld [vmem:[%s3 + $0x8] sm:$0x3]
  %v366 = vld [vmem:[%s5] sm:$0xff]
  %v367 = vld [vmem:[%s5 + $0x8] sm:$0xff]
  %v368 = vld [vmem:[%s5 + $0x10] sm:$0xf]
  %370 = vset.pattern.permute.xlu0 0
  %371 = vperm.xlu0 %370, %v366
  %v372 = vpop.permute.xlu0 %371
  %375 = vset.pattern.permute.xlu0 0
  %376 = vperm.xlu0 %375, %v367
  %v377 = vpop.permute.xlu0 %376
  %380 = vset.pattern.permute.xlu0 0
  %381 = vperm.xlu0 %380, %v368
  %v382 = vpop.permute.xlu0 %381
  %v387 = vunpack.c.l.b16 %v360
  %v388 = vunpack.c.l.b16 %v361
  %v389 = vunpack.c.l.b16 %v362
  %v390 = vpack.c.b16 %v388, %v387
  %v391 = vpack.c.b16 %v389, %v389
  %v395 = vunpack.c.l.b16 %v363
  %v396 = vunpack.c.l.b16 %v364
  %v397 = vunpack.c.l.b16 %v365
  %v398 = vpack.c.b16 %v396, %v395
  %v399 = vpack.c.b16 %v397, %v397
  %vm401 = vcmask 162816
  %v403 = vsel %vm401, %v390, 0
  %v406 = vsel %vm401, %v391, 0
  %vm408 = vcmask 1041408
  %v410 = vsel %vm408, %v399, 0
  %412 = vmatprep.subr.bf16.mxu0 0
  %413 = vmatpush1.bf16.msra.mxu0 %v398
  %414 = vmatprep.subr.bf16.mxu0 0
  %415 = vmatpush1.bf16.msra.mxu0 %v410
  %416 = vmatprep.subr.bf16.mxu0 0
  %417 = vmatpush1.bf16.msra.mxu0 0
  %418 = vmatprep.subr.bf16.mxu0 0
  %419 = vmatpush1.bf16.msra.mxu0 0
  %420 = vmatprep.subr.bf16.mxu0 0
  %421 = vmatpush1.bf16.msra.mxu0 0
  %422 = vmatprep.subr.bf16.mxu0 0
  %423 = vmatpush1.bf16.msra.mxu0 0
  %424 = vmatprep.subr.bf16.mxu0 0
  %425 = vmatpush1.bf16.msra.mxu0 0
  %426 = vmatprep.subr.bf16.mxu0 0
  %427 = vmatpush1.bf16.msra.mxu0 0
  %428 = vmatprep.subr.bf16.mxu0 0
  %429 = vmatpush1.bf16.msra.mxu0 0
  %430 = vmatprep.subr.bf16.mxu0 0
  %431 = vmatpush1.bf16.msra.mxu0 0
  %432 = vmatprep.subr.bf16.mxu0 0
  %433 = vmatpush1.bf16.msra.mxu0 0
  %434 = vmatprep.subr.bf16.mxu0 0
  %435 = vmatpush1.bf16.msra.mxu0 0
  %436 = vmatprep.subr.bf16.mxu0 0
  %437 = vmatpush1.bf16.msra.mxu0 0
  %438 = vmatprep.subr.bf16.mxu0 0
  %439 = vmatpush1.bf16.msra.mxu0 0
  %440 = vmatprep.subr.bf16.mxu0 0
  %441 = vmatpush1.bf16.msra.mxu0 0
  %442 = vmatprep.subr.bf16.mxu0 0
  %443 = vmatpush1.bf16.msra.mxu0 0
  %444 = vmatprep.mubr.bf16.mxu0 0
  %445 = vmatmul.mubr.bf16.gmra.mrb[0].mxu0 %v403
  %v446 = vpop.f32.mrb[0].mxu0
  %v447 = vadd.f32 %v372, %v446
  %v448 = vpop.f32.mrb[0].mxu0
  %v449 = vpop.f32.mrb[0].mxu0
  %v450 = vadd.f32 %v377, %v449
  %v451 = vpop.f32.mrb[0].mxu0
  %452 = vmatprep.mubr.bf16.mxu0 0
  %453 = vmatmul.mubr.bf16.gmra.mrb[0].mxu0 %v406
  %v454 = vpop.f32.mrb[0].mxu0
  %v455 = vadd.f32 %v382, %v454
  %v456 = vpop.f32.mrb[0].mxu0
  %v457 = vpop.f32.mrb[0].mxu0
  %v458 = vpop.f32.mrb[0].mxu0
  %459 = vdwg.mxu0
  %v460 = vmul.f32 %v347, %v447
  %v461 = vmul.f32 %v350, %v450
  %v462 = vmul.f32 %v355, %v455
  %v463 = vpack.c.bf16 %v461, %v460
  %v464 = vpack.c.bf16 %v462, %v462
  %v467 = vunpack.c.l.b16 %v463
  %v468 = vunpack.c.h.b16 %v463
  %v469 = vunpack.c.l.b16 %v464
  %v470 = vpack.c.b16 %v467, %v467
  %v471 = vpack.c.b16 %v468, %v468
  %v472 = vpack.c.b16 %v469, %v469
  %476 = vst [vmem:[%s6] sm:$0xf] %v470
  %477 = vst [vmem:[%s6 + $0x4] sm:$0xf] %v471
  %478 = vst [vmem:[%s6 + $0x8] sm:$0x3] %v472
  // Predicated region
  $region26: #{_lambda_.11} parent=0 // pred_check
    _
  $region27: #{_lambda_.11} parent=0 // pred_check_branch
    %480 = sbr.rel (0) target = $region29
  $region28: #{_lambda_.11} parent=0 // pred_region
    _
  $region29: #{_lambda_.11} parent=0 // pred_fallthru
    _
  // Predicated region
  $region30: #{_lambda_.11} parent=0 // pred_check
    _
  $region31: #{_lambda_.11} parent=0 // pred_check_branch
    %482 = sbr.rel (0) target = $region33
  $region32: #{_lambda_.11} parent=0 // pred_region
    _
  $region33: #{_lambda_.11} parent=0 // pred_fallthru
    _

// kernel: _lambda_.12
$region0: #{_lambda_.12}
  #allocation0 [shape = 'u32[]', space=smem, size = 0x4, offset = 0x4, fixed_abs, tag = 'smem constant byte address 0x4 - core index']
  #allocation1 [shape = 'u32[144,128]{1,0:T(1,128)}', space=vmem, size = 0x12000, scoped, tag = 'internal scratch']
  %s0 = inlined_call_operand.vmem [shape: bf16[180,128], index: 0, kind: input, shape index: {}]
  %s1 = inlined_call_operand.vmem [shape: bf16[12,180], index: 1, kind: input, shape index: {}]
  %s2 = inlined_call_operand.vmem [shape: f32[12,1], index: 2, kind: input, shape index: {}]
  %s3 = inlined_call_operand.vmem [shape: bf16[12,128], index: 3, kind: input, shape index: {}]
  %s4 = inlined_call_operand.vmem [shape: bf16[12,12], index: 4, kind: input, shape index: {}]
  %s5 = inlined_call_operand.vmem [shape: f32[12,1], index: 5, kind: input, shape index: {}]
  %s6 = inlined_call_operand.vmem [shape: bf16[12,128], index: 6, kind: output, shape index: {}]
  %s7 = sld [smem:[#allocation0]]
  $region34: #{_lambda_.12} parent=0
    _
  %s9 = ssub.s32 1, %s7
  %s10 = scalar_select 0, %s9, %s7
  // Predicated region
  $region2: #{_lambda_.12} parent=0 // pred_check
    _
  $region3: #{_lambda_.12} parent=0 // pred_check_branch
    %12 = sbr.rel (0) target = $region5
  $region4: #{_lambda_.12} parent=0 // pred_region
    _
  $region5: #{_lambda_.12} parent=0 // pred_fallthru
    _
  // Predicated region
  $region6: #{_lambda_.12} parent=0 // pred_check
    _
  $region7: #{_lambda_.12} parent=0 // pred_check_branch
    %14 = sbr.rel (0) target = $region9
  $region8: #{_lambda_.12} parent=0 // pred_region
    _
  $region9: #{_lambda_.12} parent=0 // pred_fallthru
    _
  // Predicated region
  $region10: #{_lambda_.12} parent=0 // pred_check
    _
  $region11: #{_lambda_.12} parent=0 // pred_check_branch
    %16 = sbr.rel (0) target = $region13
  $region12: #{_lambda_.12} parent=0 // pred_region
    _
  $region13: #{_lambda_.12} parent=0 // pred_fallthru
    _
  // Predicated region
  $region14: #{_lambda_.12} parent=0 // pred_check
    _
  $region15: #{_lambda_.12} parent=0 // pred_check_branch
    %18 = sbr.rel (0) target = $region17
  $region16: #{_lambda_.12} parent=0 // pred_region
    _
  $region17: #{_lambda_.12} parent=0 // pred_fallthru
    _
  // Predicated region
  $region18: #{_lambda_.12} parent=0 // pred_check
    _
  $region19: #{_lambda_.12} parent=0 // pred_check_branch
    %20 = sbr.rel (0) target = $region21
  $region20: #{_lambda_.12} parent=0 // pred_region
    _
  $region21: #{_lambda_.12} parent=0 // pred_fallthru
    _
  // Predicated region
  $region22: #{_lambda_.12} parent=0 // pred_check
    _
  $region23: #{_lambda_.12} parent=0 // pred_check_branch
    %22 = sbr.rel (0) target = $region25
  $region24: #{_lambda_.12} parent=0 // pred_region
    _
  $region25: #{_lambda_.12} parent=0 // pred_fallthru
    _
  %v24 = vld [vmem:[%s1] sm:$0xff]
  %v25 = vld [vmem:[%s1 + $0x8] sm:$0x33]
  %v26 = vld [vmem:[%s0] sm:$0xf]
  %v27 = vld [vmem:[%s0 + $0x4] sm:$0xf]
  %v28 = vld [vmem:[%s0 + $0x8] sm:$0xf]
  %v29 = vld [vmem:[%s0 + $0xc] sm:$0xf]
  %v30 = vld [vmem:[%s0 + $0x10] sm:$0xf]
  %v31 = vld [vmem:[%s0 + $0x14] sm:$0xf]
  %v32 = vld [vmem:[%s0 + $0x18] sm:$0xf]
  %v33 = vld [vmem:[%s0 + $0x1c] sm:$0xf]
  %v34 = vld [vmem:[%s0 + $0x20] sm:$0xf]
  %v35 = vld [vmem:[%s0 + $0x24] sm:$0xf]
  %v36 = vld [vmem:[%s0 + $0x28] sm:$0xf]
  %v37 = vld [vmem:[%s0 + $0x2c] sm:$0xf]
  %v38 = vld [vmem:[%s0 + $0x30] sm:$0xf]
  %v39 = vld [vmem:[%s0 + $0x34] sm:$0xf]
  %v40 = vld [vmem:[%s0 + $0x38] sm:$0xf]
  %v41 = vld [vmem:[%s0 + $0x3c] sm:$0xf]
  %v42 = vld [vmem:[%s0 + $0x40] sm:$0xf]
  %v43 = vld [vmem:[%s0 + $0x44] sm:$0xf]
  %v44 = vld [vmem:[%s0 + $0x48] sm:$0xf]
  %v45 = vld [vmem:[%s0 + $0x4c] sm:$0xf]
  %v46 = vld [vmem:[%s0 + $0x50] sm:$0xf]
  %v47 = vld [vmem:[%s0 + $0x54] sm:$0xf]
  %v48 = vld [vmem:[%s0 + $0x58] sm:$0x3]
  %v49 = vld [vmem:[%s2] sm:$0xff]
  %v50 = vld [vmem:[%s2 + $0x8] sm:$0xf]
  %52 = vset.pattern.permute.xlu0 0
  %53 = vperm.xlu0 %52, %v49
  %v54 = vpop.permute.xlu0 %53
  %57 = vset.pattern.permute.xlu0 0
  %58 = vperm.xlu0 %57, %v50
  %v59 = vpop.permute.xlu0 %58
  %v63 = vunpack.c.l.b16 %v24
  %v64 = vunpack.c.h.b16 %v24
  %v65 = vunpack.c.l.b16 %v25
  %v66 = vunpack.c.h.b16 %v25
  %v67 = vpack.c.b16 %v65, %v63
  %v68 = vpack.c.b16 %v66, %v64
  %v93 = vunpack.c.l.b16 %v26
  %v94 = vunpack.c.l.b16 %v27
  %v95 = vunpack.c.l.b16 %v28
  %v96 = vunpack.c.l.b16 %v29
  %v97 = vunpack.c.l.b16 %v30
  %v98 = vunpack.c.l.b16 %v31
  %v99 = vunpack.c.l.b16 %v32
  %v100 = vunpack.c.l.b16 %v33
  %v101 = vunpack.c.l.b16 %v34
  %v102 = vunpack.c.l.b16 %v35
  %v103 = vunpack.c.l.b16 %v36
  %v104 = vunpack.c.l.b16 %v37
  %v105 = vunpack.c.l.b16 %v38
  %v106 = vunpack.c.l.b16 %v39
  %v107 = vunpack.c.l.b16 %v40
  %v108 = vunpack.c.l.b16 %v41
  %v109 = vunpack.c.l.b16 %v42
  %v110 = vunpack.c.l.b16 %v43
  %v111 = vunpack.c.l.b16 %v44
  %v112 = vunpack.c.l.b16 %v45
  %v113 = vunpack.c.l.b16 %v46
  %v114 = vunpack.c.l.b16 %v47
  %v115 = vunpack.c.l.b16 %v48
  %v116 = vpack.c.b16 %v94, %v93
  %v117 = vpack.c.b16 %v96, %v95
  %v118 = vpack.c.b16 %v98, %v97
  %v119 = vpack.c.b16 %v100, %v99
  %v120 = vpack.c.b16 %v102, %v101
  %v121 = vpack.c.b16 %v104, %v103
  %v122 = vpack.c.b16 %v106, %v105
  %v123 = vpack.c.b16 %v108, %v107
  %v124 = vpack.c.b16 %v110, %v109
  %v125 = vpack.c.b16 %v112, %v111
  %v126 = vpack.c.b16 %v114, %v113
  %v127 = vpack.c.b16 %v115, %v115
  %vm139 = vcmask 424960
  %v141 = vsel %vm139, %v68, 0
  %vm143 = vcmask 1041408
  %v145 = vsel %vm143, %v127, 0
  %147 = vmatprep.subr.bf16.mxu0 0
  %148 = vmatpush1.bf16.msra.mxu0 %v116
  %149 = vmatprep.subr.bf16.mxu0 0
  %150 = vmatpush1.bf16.msra.mxu0 %v117
  %151 = vmatprep.subr.bf16.mxu0 0
  %152 = vmatpush1.bf16.msra.mxu0 %v118
  %153 = vmatprep.subr.bf16.mxu0 0
  %154 = vmatpush1.bf16.msra.mxu0 %v119
  %155 = vmatprep.subr.bf16.mxu0 0
  %156 = vmatpush1.bf16.msra.mxu0 %v120
  %157 = vmatprep.subr.bf16.mxu0 0
  %158 = vmatpush1.bf16.msra.mxu0 %v121
  %159 = vmatprep.subr.bf16.mxu0 0
  %160 = vmatpush1.bf16.msra.mxu0 %v122
  %161 = vmatprep.subr.bf16.mxu0 0
  %162 = vmatpush1.bf16.msra.mxu0 %v123
  %163 = vmatprep.subr.bf16.mxu0 0
  %164 = vmatpush1.bf16.msra.mxu0 %v124
  %165 = vmatprep.subr.bf16.mxu0 0
  %166 = vmatpush1.bf16.msra.mxu0 %v125
  %167 = vmatprep.subr.bf16.mxu0 0
  %168 = vmatpush1.bf16.msra.mxu0 %v126
  %169 = vmatprep.subr.bf16.mxu0 0
  %170 = vmatpush1.bf16.msra.mxu0 %v145
  %171 = vmatprep.subr.bf16.mxu0 0
  %172 = vmatpush1.bf16.msra.mxu0 0
  %173 = vmatprep.subr.bf16.mxu0 0
  %174 = vmatpush1.bf16.msra.mxu0 0
  %175 = vmatprep.subr.bf16.mxu0 0
  %176 = vmatpush1.bf16.msra.mxu0 0
  %177 = vmatprep.subr.bf16.mxu0 0
  %178 = vmatpush1.bf16.msra.mxu0 0
  %179 = vmatprep.mubr.bf16.mxu0 %v141
  %180 = vmatmul.mubr.bf16.gmra.mrb[0].mxu0 %v67
  %v181 = vpop.f32.mrb[0].mxu0
  %v182 = vadd.f32 %v54, %v181
  %v183 = vpop.f32.mrb[0].mxu0
  %v184 = vpop.f32.mrb[0].mxu0
  %v185 = vadd.f32 %v59, %v184
  %v186 = vpop.f32.mrb[0].mxu0
  %187 = vdwg.mxu0
  %v188 = vld [vmem:[%s4] sm:$0xf]
  %v189 = vld [vmem:[%s4 + $0x4] sm:$0x3]
  %v190 = vld [vmem:[%s3] sm:$0xf]
  %v191 = vld [vmem:[%s3 + $0x4] sm:$0x3]
  %v192 = vld [vmem:[%s5] sm:$0xff]
  %v193 = vld [vmem:[%s5 + $0x8] sm:$0xf]
  %195 = vset.pattern.permute.xlu0 0
  %196 = vperm.xlu0 %195, %v192
  %v197 = vpop.permute.xlu0 %196
  %200 = vset.pattern.permute.xlu0 0
  %201 = vperm.xlu0 %200, %v193
  %v202 = vpop.permute.xlu0 %201
  %v206 = vunpack.c.l.b16 %v188
  %v207 = vunpack.c.l.b16 %v189
  %v208 = vpack.c.b16 %v207, %v206
  %v211 = vunpack.c.l.b16 %v190
  %v212 = vunpack.c.l.b16 %v191
  %v213 = vpack.c.b16 %v212, %v211
  %vm214 = vcmask 97280
  %v216 = vsel %vm214, %v208, 0
  %vm218 = vcmask 1045504
  %v220 = vsel %vm218, %v213, 0
  %222 = vmatprep.subr.bf16.mxu0 0
  %223 = vmatpush1.bf16.msra.mxu0 %v220
  %224 = vmatprep.subr.bf16.mxu0 0
  %225 = vmatpush1.bf16.msra.mxu0 0
  %226 = vmatprep.subr.bf16.mxu0 0
  %227 = vmatpush1.bf16.msra.mxu0 0
  %228 = vmatprep.subr.bf16.mxu0 0
  %229 = vmatpush1.bf16.msra.mxu0 0
  %230 = vmatprep.subr.bf16.mxu0 0
  %231 = vmatpush1.bf16.msra.mxu0 0
  %232 = vmatprep.subr.bf16.mxu0 0
  %233 = vmatpush1.bf16.msra.mxu0 0
  %234 = vmatprep.subr.bf16.mxu0 0
  %235 = vmatpush1.bf16.msra.mxu0 0
  %236 = vmatprep.subr.bf16.mxu0 0
  %237 = vmatpush1.bf16.msra.mxu0 0
  %238 = vmatprep.subr.bf16.mxu0 0
  %239 = vmatpush1.bf16.msra.mxu0 0
  %240 = vmatprep.subr.bf16.mxu0 0
  %241 = vmatpush1.bf16.msra.mxu0 0
  %242 = vmatprep.subr.bf16.mxu0 0
  %243 = vmatpush1.bf16.msra.mxu0 0
  %244 = vmatprep.subr.bf16.mxu0 0
  %245 = vmatpush1.bf16.msra.mxu0 0
  %246 = vmatprep.subr.bf16.mxu0 0
  %247 = vmatpush1.bf16.msra.mxu0 0
  %248 = vmatprep.subr.bf16.mxu0 0
  %249 = vmatpush1.bf16.msra.mxu0 0
  %250 = vmatprep.subr.bf16.mxu0 0
  %251 = vmatpush1.bf16.msra.mxu0 0
  %252 = vmatprep.subr.bf16.mxu0 0
  %253 = vmatpush1.bf16.msra.mxu0 0
  %254 = vmatprep.mubr.bf16.mxu0 0
  %255 = vmatmul.mubr.bf16.gmra.mrb[0].mxu0 %v216
  %v256 = vpop.f32.mrb[0].mxu0
  %v257 = vadd.f32 %v197, %v256
  %v258 = vpop.f32.mrb[0].mxu0
  %v259 = vpop.f32.mrb[0].mxu0
  %v260 = vadd.f32 %v202, %v259
  %v261 = vpop.f32.mrb[0].mxu0
  %262 = vdwg.mxu0
  %v263 = vmul.f32 %v182, %v257
  %v264 = vmul.f32 %v185, %v260
  %v265 = vpack.c.bf16 %v264, %v263
  %v267 = vunpack.c.l.b16 %v265
  %v268 = vunpack.c.h.b16 %v265
  %v269 = vpack.c.b16 %v267, %v267
  %v270 = vpack.c.b16 %v268, %v268
  %273 = vst [vmem:[%s6] sm:$0xf] %v269
  %274 = vst [vmem:[%s6 + $0x4] sm:$0x3] %v270
  // Predicated region
  $region26: #{_lambda_.12} parent=0 // pred_check
    _
  $region27: #{_lambda_.12} parent=0 // pred_check_branch
    %276 = sbr.rel (0) target = $region29
  $region28: #{_lambda_.12} parent=0 // pred_region
    _
  $region29: #{_lambda_.12} parent=0 // pred_fallthru
    _
  // Predicated region
  $region30: #{_lambda_.12} parent=0 // pred_check
    _
  $region31: #{_lambda_.12} parent=0 // pred_check_branch
    %278 = sbr.rel (0) target = $region33
  $region32: #{_lambda_.12} parent=0 // pred_region
    _
  $region33: #{_lambda_.12} parent=0 // pred_fallthru
    _

// kernel: _lambda_.13
$region0: #{_lambda_.13}
  #allocation0 [shape = 'u32[]', space=smem, size = 0x4, offset = 0x4, fixed_abs, tag = 'smem constant byte address 0x4 - core index']
  #allocation1 [shape = 'u32[144,128]{1,0:T(1,128)}', space=vmem, size = 0x12000, scoped, tag = 'internal scratch']
  #allocation2 [shape = 'f32[1,1]{1,0:T(1,128)S(1)}', space=vmem, size = 0x200, scoped, tag = 'scoped memory for _lambda_.13']
  %s0 = inlined_call_operand.vmem [shape: bf16[108,512], index: 0, kind: input, shape index: {}]
  %s1 = inlined_call_operand.vmem [shape: bf16[6,108], index: 1, kind: input, shape index: {}]
  %s2 = inlined_call_operand.vmem [shape: f32[6,1], index: 2, kind: input, shape index: {}]
  %s3 = inlined_call_operand.vmem [shape: bf16[6,512], index: 3, kind: input, shape index: {}]
  %s4 = inlined_call_operand.vmem [shape: bf16[6,6], index: 4, kind: input, shape index: {}]
  %s5 = inlined_call_operand.vmem [shape: f32[6,1], index: 5, kind: input, shape index: {}]
  %s6 = inlined_call_operand.vmem [shape: bf16[1,6], index: 6, kind: input, shape index: {}]
  %s7 = inlined_call_operand.<no memory space> [shape: f32[1,1], index: 7, kind: input, shape index: {}]
  %s8 = inlined_call_operand.vmem [shape: f32[1,512], index: 8, kind: output, shape index: {}]
  %s9 = sld [smem:[#allocation0]]
  $region103: #{_lambda_.13} parent=0
    _
  %s11 = ssub.s32 1, %s9
  %s12 = scalar_select 0, %s11, %s9
  %v13 = vstv %s7
  %14 = vst [vmem:[#allocation2] sm:$0x1] %v13
  $region1: #{_lambda_.13} parent=0
    #allocation3 [shape = 'u8[114688]{0}', space=vmem, size = 0x1c000, scoped, tag = 'input window, operand 0']
    loop: start=0, step=1, limit=4
    $region2: #{_lambda_.13} parent=1 // loop_pre_header
      _
    $region3: #{_lambda_.13} parent=1 // loop_header
      %s16 = sphi 0, %s20
      %p17 = scmp.ge.s32.totalorder %s16, 4
      %s26 = sphi 0, %s28
      %s29 = sphi 0, %s26
      %s30 = sphi 0, %s29
      %s46 = sphi 0, %s30
      %s50 = sphi 0, %s50
      %s52 = sphi 0, %s50
      %s53 = sphi 0, %s52
      %s67 = sphi 0, %s53
      %s71 = sphi 0, %s71
      %s73 = sphi 0, %s71
      %s74 = sphi 0, %s73
      %s88 = sphi 0, %s74
      %s94 = sphi 0, %s96
      %s97 = sphi 0, %s94
      %s98 = sphi 0, %s97
      %s114 = sphi 0, %s98
      %s118 = sphi 0, %s118
      %s120 = sphi 0, %s118
      %s121 = sphi 0, %s120
      %s135 = sphi 0, %s121
      %s139 = sphi 0, %s139
      %s141 = sphi 0, %s139
      %s142 = sphi 0, %s141
      %s156 = sphi 0, %s142
      %s160 = sphi 0, %s160
      %s162 = sphi 0, %s160
      %s163 = sphi 0, %s162
      %s177 = sphi 0, %s163
      %s181 = sphi 0, %s181
      %s183 = sphi 0, %s181
      %s184 = sphi 0, %s183
      %s198 = sphi 0, %s184
      %s204 = sphi 0, %s206
      %s207 = sphi 0, %s204
      %s208 = sphi 0, %s207
      %s224 = sphi 0, %s208
    $region4: #{_lambda_.13} parent=1 // loop_header_branch
      %19 = sbr.rel (%p17) target = $region8
    $region5: #{_lambda_.13} parent=1 // loop_body
      %s21 = ssub.s32 %s16, 1
      %s22 = ssub.s32 %s16, 2
      %s23 = sadd.s32 %s16, 1
      %s24 = ssub.s32 %s16, %s23
      %p25 = scmp.eq.s32.totalorder %s24, 0
      %s27 = sadd.s32 %s26, 1
      %s28 = scalar_select %p25, %s26, %s27
      %p31 = pneg %p25
      %p32 = scmp.eq.s32.totalorder %s16, 1
      %p33 = por %p31, %p32
      %p34 = scmp.ne.s32.totalorder %s26, %s29
      %p35 = scmp.eq.s32.totalorder %s16, 0
      %p36 = por %p34, %p35
      %p37 = scmp.ne.s32.totalorder %s26, %s29
      %p38 = scmp.eq.s32.totalorder %s21, 1
      %p39 = por %p37, %p38
      %p40 = scmp.ne.s32.totalorder %s29, %s30
      %p41 = scmp.eq.s32.totalorder %s21, 0
      %p42 = por %p40, %p41
      %p43 = scmp.ne.s32.totalorder %s29, %s30
      %p44 = scmp.eq.s32.totalorder %s22, 1
      %p45 = por %p43, %p44
      %p47 = scmp.ne.s32.totalorder %s30, %s46
      %p48 = scmp.eq.s32.totalorder %s22, 0
      %p49 = por %p47, %p48
      %s51 = sadd.s32 %s50, 1
      %p54 = scmp.eq.s32.totalorder %s16, 1
      %p55 = scmp.ne.s32.totalorder %s50, %s52
      %p56 = scmp.eq.s32.totalorder %s16, 0
      %p57 = por %p55, %p56
      %p58 = scmp.ne.s32.totalorder %s50, %s52
      %p59 = scmp.eq.s32.totalorder %s21, 1
      %p60 = por %p58, %p59
      %p61 = scmp.ne.s32.totalorder %s52, %s53
      %p62 = scmp.eq.s32.totalorder %s21, 0
      %p63 = por %p61, %p62
      %p64 = scmp.ne.s32.totalorder %s52, %s53
      %p65 = scmp.eq.s32.totalorder %s22, 1
      %p66 = por %p64, %p65
      %p68 = scmp.ne.s32.totalorder %s53, %s67
      %p69 = scmp.eq.s32.totalorder %s22, 0
      %p70 = por %p68, %p69
      %s72 = sadd.s32 %s71, 1
      %p75 = scmp.eq.s32.totalorder %s16, 1
      %p76 = scmp.ne.s32.totalorder %s71, %s73
      %p77 = scmp.eq.s32.totalorder %s16, 0
      %p78 = por %p76, %p77
      %p79 = scmp.ne.s32.totalorder %s71, %s73
      %p80 = scmp.eq.s32.totalorder %s21, 1
      %p81 = por %p79, %p80
      %p82 = scmp.ne.s32.totalorder %s73, %s74
      %p83 = scmp.eq.s32.totalorder %s21, 0
      %p84 = por %p82, %p83
      %p85 = scmp.ne.s32.totalorder %s73, %s74
      %p86 = scmp.eq.s32.totalorder %s22, 1
      %p87 = por %p85, %p86
      %p89 = scmp.ne.s32.totalorder %s74, %s88
      %p90 = scmp.eq.s32.totalorder %s22, 0
      %p91 = por %p89, %p90
      %s92 = ssub.s32 %s16, %s23
      %p93 = scmp.eq.s32.totalorder %s92, 0
      %s95 = sadd.s32 %s94, 1
      %s96 = scalar_select %p93, %s94, %s95
      %p99 = pneg %p93
      %p100 = scmp.eq.s32.totalorder %s16, 1
      %p101 = por %p99, %p100
      %p102 = scmp.ne.s32.totalorder %s94, %s97
      %p103 = scmp.eq.s32.totalorder %s16, 0
      %p104 = por %p102, %p103
      %p105 = scmp.ne.s32.totalorder %s94, %s97
      %p106 = scmp.eq.s32.totalorder %s21, 1
      %p107 = por %p105, %p106
      %p108 = scmp.ne.s32.totalorder %s97, %s98
      %p109 = scmp.eq.s32.totalorder %s21, 0
      %p110 = por %p108, %p109
      %p111 = scmp.ne.s32.totalorder %s97, %s98
      %p112 = scmp.eq.s32.totalorder %s22, 1
      %p113 = por %p111, %p112
      %p115 = scmp.ne.s32.totalorder %s98, %s114
      %p116 = scmp.eq.s32.totalorder %s22, 0
      %p117 = por %p115, %p116
      %s119 = sadd.s32 %s118, 1
      %p122 = scmp.eq.s32.totalorder %s16, 1
      %p123 = scmp.ne.s32.totalorder %s118, %s120
      %p124 = scmp.eq.s32.totalorder %s16, 0
      %p125 = por %p123, %p124
      %p126 = scmp.ne.s32.totalorder %s118, %s120
      %p127 = scmp.eq.s32.totalorder %s21, 1
      %p128 = por %p126, %p127
      %p129 = scmp.ne.s32.totalorder %s120, %s121
      %p130 = scmp.eq.s32.totalorder %s21, 0
      %p131 = por %p129, %p130
      %p132 = scmp.ne.s32.totalorder %s120, %s121
      %p133 = scmp.eq.s32.totalorder %s22, 1
      %p134 = por %p132, %p133
      %p136 = scmp.ne.s32.totalorder %s121, %s135
      %p137 = scmp.eq.s32.totalorder %s22, 0
      %p138 = por %p136, %p137
      %s140 = sadd.s32 %s139, 1
      %p143 = scmp.eq.s32.totalorder %s16, 1
      %p144 = scmp.ne.s32.totalorder %s139, %s141
      %p145 = scmp.eq.s32.totalorder %s16, 0
      %p146 = por %p144, %p145
      %p147 = scmp.ne.s32.totalorder %s139, %s141
      %p148 = scmp.eq.s32.totalorder %s21, 1
      %p149 = por %p147, %p148
      %p150 = scmp.ne.s32.totalorder %s141, %s142
      %p151 = scmp.eq.s32.totalorder %s21, 0
      %p152 = por %p150, %p151
      %p153 = scmp.ne.s32.totalorder %s141, %s142
      %p154 = scmp.eq.s32.totalorder %s22, 1
      %p155 = por %p153, %p154
      %p157 = scmp.ne.s32.totalorder %s142, %s156
      %p158 = scmp.eq.s32.totalorder %s22, 0
      %p159 = por %p157, %p158
      %s161 = sadd.s32 %s160, 1
      %p164 = scmp.eq.s32.totalorder %s16, 1
      %p165 = scmp.ne.s32.totalorder %s160, %s162
      %p166 = scmp.eq.s32.totalorder %s16, 0
      %p167 = por %p165, %p166
      %p168 = scmp.ne.s32.totalorder %s160, %s162
      %p169 = scmp.eq.s32.totalorder %s21, 1
      %p170 = por %p168, %p169
      %p171 = scmp.ne.s32.totalorder %s162, %s163
      %p172 = scmp.eq.s32.totalorder %s21, 0
      %p173 = por %p171, %p172
      %p174 = scmp.ne.s32.totalorder %s162, %s163
      %p175 = scmp.eq.s32.totalorder %s22, 1
      %p176 = por %p174, %p175
      %p178 = scmp.ne.s32.totalorder %s163, %s177
      %p179 = scmp.eq.s32.totalorder %s22, 0
      %p180 = por %p178, %p179
      %s182 = sadd.s32 %s181, 1
      %p185 = scmp.eq.s32.totalorder %s16, 1
      %p186 = scmp.ne.s32.totalorder %s181, %s183
      %p187 = scmp.eq.s32.totalorder %s16, 0
      %p188 = por %p186, %p187
      %p189 = scmp.ne.s32.totalorder %s181, %s183
      %p190 = scmp.eq.s32.totalorder %s21, 1
      %p191 = por %p189, %p190
      %p192 = scmp.ne.s32.totalorder %s183, %s184
      %p193 = scmp.eq.s32.totalorder %s21, 0
      %p194 = por %p192, %p193
      %p195 = scmp.ne.s32.totalorder %s183, %s184
      %p196 = scmp.eq.s32.totalorder %s22, 1
      %p197 = por %p195, %p196
      %p199 = scmp.ne.s32.totalorder %s184, %s198
      %p200 = scmp.eq.s32.totalorder %s22, 0
      %p201 = por %p199, %p200
      %s202 = ssub.s32 %s16, %s23
      %p203 = scmp.eq.s32.totalorder %s202, 0
      %s205 = sadd.s32 %s204, 1
      %s206 = scalar_select %p203, %s204, %s205
      %p209 = pneg %p203
      %p210 = scmp.eq.s32.totalorder %s16, 1
      %p211 = por %p209, %p210
      %p212 = scmp.ne.s32.totalorder %s204, %s207
      %p213 = scmp.eq.s32.totalorder %s16, 0
      %p214 = por %p212, %p213
      %p215 = scmp.ne.s32.totalorder %s204, %s207
      %p216 = scmp.eq.s32.totalorder %s21, 1
      %p217 = por %p215, %p216
      %p218 = scmp.ne.s32.totalorder %s207, %s208
      %p219 = scmp.eq.s32.totalorder %s21, 0
      %p220 = por %p218, %p219
      %p221 = scmp.ne.s32.totalorder %s207, %s208
      %p222 = scmp.eq.s32.totalorder %s22, 1
      %p223 = por %p221, %p222
      %p225 = scmp.ne.s32.totalorder %s208, %s224
      %p226 = scmp.eq.s32.totalorder %s22, 0
      %p227 = por %p225, %p226
      %p228 = scmp.le.s32.totalorder 1, %s16
      %p229 = scmp.lt.s32.totalorder %s16, 3
      %p230 = pnand %p228, %p229
      %p231 = pneg %p230
      // Predicated region
      $region9: #{_lambda_.13} parent=5 // pred_check
        _
      $region10: #{_lambda_.13} parent=5 // pred_check_branch
        %233 = sbr.rel (%p230) target = $region12
      $region11: #{_lambda_.13} parent=5 // pred_region
        %s234 = ssub.s32 %s16, 1
        // Predicated region
        $region13: #{_lambda_.13} parent=11 // pred_check
          %p235 = pneg %p63
        $region14: #{_lambda_.13} parent=11 // pred_check_branch
          %237 = sbr.rel (%p235) target = $region16
        $region15: #{_lambda_.13} parent=11 // pred_region
          _
        $region16: #{_lambda_.13} parent=11 // pred_fallthru
          _
        // Predicated region
        $region17: #{_lambda_.13} parent=11 // pred_check
          %p238 = pneg %p84
        $region18: #{_lambda_.13} parent=11 // pred_check_branch
          %240 = sbr.rel (%p238) target = $region20
        $region19: #{_lambda_.13} parent=11 // pred_region
          _
        $region20: #{_lambda_.13} parent=11 // pred_fallthru
          _
        // Predicated region
        $region21: #{_lambda_.13} parent=11 // pred_check
          %p241 = pneg %p131
        $region22: #{_lambda_.13} parent=11 // pred_check_branch
          %243 = sbr.rel (%p241) target = $region24
        $region23: #{_lambda_.13} parent=11 // pred_region
          _
        $region24: #{_lambda_.13} parent=11 // pred_fallthru
          _
        // Predicated region
        $region25: #{_lambda_.13} parent=11 // pred_check
          %p244 = pneg %p152
        $region26: #{_lambda_.13} parent=11 // pred_check_branch
          %246 = sbr.rel (%p244) target = $region28
        $region27: #{_lambda_.13} parent=11 // pred_region
          _
        $region28: #{_lambda_.13} parent=11 // pred_fallthru
          _
        // Predicated region
        $region29: #{_lambda_.13} parent=11 // pred_check
          %p247 = pneg %p173
        $region30: #{_lambda_.13} parent=11 // pred_check_branch
          %249 = sbr.rel (%p247) target = $region32
        $region31: #{_lambda_.13} parent=11 // pred_region
          _
        $region32: #{_lambda_.13} parent=11 // pred_fallthru
          _
        // Predicated region
        $region33: #{_lambda_.13} parent=11 // pred_check
          %p250 = pneg %p194
        $region34: #{_lambda_.13} parent=11 // pred_check_branch
          %252 = sbr.rel (%p250) target = $region36
        $region35: #{_lambda_.13} parent=11 // pred_region
          _
        $region36: #{_lambda_.13} parent=11 // pred_fallthru
          _
      $region12: #{_lambda_.13} parent=5 // pred_fallthru
        _
      %p253 = scmp.lt.s32.totalorder %s16, 2
      // Predicated region
      $region37: #{_lambda_.13} parent=5 // pred_check
        %p254 = pneg %p253
      $region38: #{_lambda_.13} parent=5 // pred_check_branch
        %256 = sbr.rel (%p254) target = $region40
      $region39: #{_lambda_.13} parent=5 // pred_region
        // Predicated region
        $region41: #{_lambda_.13} parent=39 // pred_check
          %p257 = pneg %p36
        $region42: #{_lambda_.13} parent=39 // pred_check_branch
          %259 = sbr.rel (%p257) target = $region44
        $region43: #{_lambda_.13} parent=39 // pred_region
          %s260 = sand.u32 %s26, 1
          %s261 = sand.u32 %s26, 1
          %s262 = smul.addr %s261, 112
          %s263 = scalar_lea.vmem [#allocation3], %s262
          %s264 = smul.u32 2, %s16
          %s265 = smul.addr %s264, 4
          %s266 = scalar_lea.vmem %s0, %s265
          // Predicated region
          $region45: #{_lambda_.13} parent=43 // pred_check
            _
          $region46: #{_lambda_.13} parent=43 // pred_check_branch
            %268 = sbr.rel (0) target = $region48
          $region47: #{_lambda_.13} parent=43 // pred_region
            // Predicated region
            $region49: #{_lambda_.13} parent=47 // pred_check
              _
            $region50: #{_lambda_.13} parent=47 // pred_check_branch
              %270 = sbr.rel (0) target = $region52
            $region51: #{_lambda_.13} parent=47 // pred_region
              // Predicated region
              $region64: #{_lambda_.13} parent=51 // pred_check
                _
              $region65: #{_lambda_.13} parent=51 // pred_check_branch
                %311 = sbr.rel (0) target = $region67
              $region66: #{_lambda_.13} parent=51 // pred_region
                loop: start=0, step=1, limit=1
                $region68: #{_lambda_.13} parent=66 // loop_pre_header
                  _
                $region69: #{_lambda_.13} parent=66 // loop_header
                  %s313 = sphi 0, %s317
                  %p314 = scmp.ge.s32.totalorder %s313, 1
                  %s318 = sphi %s266, %s266
                  %s319 = sphi %s263, %s263
                $region70: #{_lambda_.13} parent=66 // loop_header_branch
                  %316 = sbr.rel (%p314) target = $region74
                $region71: #{_lambda_.13} parent=66 // loop_body
                  %v320 = vld [vmem:[%s318] sm:$0xff]
                  %321 = vst [vmem:[%s319] sm:$0xff] %v320
                  %v322 = vld [vmem:[%s318 + $0x10] sm:$0xff]
                  %323 = vst [vmem:[%s319 + $0x8] sm:$0xff] %v322
                  %v324 = vld [vmem:[%s318 + $0x20] sm:$0xff]
                  %325 = vst [vmem:[%s319 + $0x10] sm:$0xff] %v324
                  %v326 = vld [vmem:[%s318 + $0x30] sm:$0xff]
                  %327 = vst [vmem:[%s319 + $0x18] sm:$0xff] %v326
                  %v328 = vld [vmem:[%s318 + $0x40] sm:$0xff]
                  %329 = vst [vmem:[%s319 + $0x20] sm:$0xff] %v328
                  %v330 = vld [vmem:[%s318 + $0x50] sm:$0xff]
                  %331 = vst [vmem:[%s319 + $0x28] sm:$0xff] %v330
                  %v332 = vld [vmem:[%s318 + $0x60] sm:$0xff]
                  %333 = vst [vmem:[%s319 + $0x30] sm:$0xff] %v332
                  %v334 = vld [vmem:[%s318 + $0x70] sm:$0xff]
                  %335 = vst [vmem:[%s319 + $0x38] sm:$0xff] %v334
                  %v336 = vld [vmem:[%s318 + $0x80] sm:$0xff]
                  %337 = vst [vmem:[%s319 + $0x40] sm:$0xff] %v336
                  %v338 = vld [vmem:[%s318 + $0x90] sm:$0xff]
                  %339 = vst [vmem:[%s319 + $0x48] sm:$0xff] %v338
                  %v340 = vld [vmem:[%s318 + $0xa0] sm:$0xff]
                  %341 = vst [vmem:[%s319 + $0x50] sm:$0xff] %v340
                  %v342 = vld [vmem:[%s318 + $0xb0] sm:$0xff]
                  %343 = vst [vmem:[%s319 + $0x58] sm:$0xff] %v342
                  %v344 = vld [vmem:[%s318 + $0xc0] sm:$0xff]
                  %345 = vst [vmem:[%s319 + $0x60] sm:$0xff] %v344
                  %v346 = vld [vmem:[%s318 + $0xd0] sm:$0xff]
                  %347 = vst [vmem:[%s319 + $0x68] sm:$0xff] %v346
                $region72: #{_lambda_.13} parent=66 // loop_footer
                  %s317 = sadd.s32 1, %s313
                $region73: #{_lambda_.13} parent=66 // loop_footer_branch
                  %312 = sbr.rel target = $region69
                $region74: #{_lambda_.13} parent=66 // loop_exit
                  _
              $region67: #{_lambda_.13} parent=51 // pred_fallthru
                _
              // Predicated region
              $region75: #{_lambda_.13} parent=51 // pred_check
                _
              $region76: #{_lambda_.13} parent=51 // pred_check_branch
                %349 = sbr.rel target = $region78
              $region77: #{_lambda_.13} parent=51 // pred_region
                _
              $region78: #{_lambda_.13} parent=51 // pred_fallthru
                _
            $region52: #{_lambda_.13} parent=47 // pred_fallthru
              _
            // Predicated region
            $region53: #{_lambda_.13} parent=47 // pred_check
              _
            $region54: #{_lambda_.13} parent=47 // pred_check_branch
              %272 = sbr.rel target = $region56
            $region55: #{_lambda_.13} parent=47 // pred_region
              loop: start=0, step=1, limit=1
              $region57: #{_lambda_.13} parent=55 // loop_pre_header
                _
              $region58: #{_lambda_.13} parent=55 // loop_header
                %s275 = sphi 0, %s279
                %p276 = scmp.ge.s32.totalorder %s275, 1
                %s280 = sphi %s266, %s266
                %s281 = sphi %s263, %s263
              $region59: #{_lambda_.13} parent=55 // loop_header_branch
                %278 = sbr.rel (%p276) target = $region63
              $region60: #{_lambda_.13} parent=55 // loop_body
                %v282 = vld [vmem:[%s280] sm:$0xff]
                %283 = vst [vmem:[%s281] sm:$0xff] %v282
                %v284 = vld [vmem:[%s280 + $0x10] sm:$0xff]
                %285 = vst [vmem:[%s281 + $0x8] sm:$0xff] %v284
                %v286 = vld [vmem:[%s280 + $0x20] sm:$0xff]
                %287 = vst [vmem:[%s281 + $0x10] sm:$0xff] %v286
                %v288 = vld [vmem:[%s280 + $0x30] sm:$0xff]
                %289 = vst [vmem:[%s281 + $0x18] sm:$0xff] %v288
                %v290 = vld [vmem:[%s280 + $0x40] sm:$0xff]
                %291 = vst [vmem:[%s281 + $0x20] sm:$0xff] %v290
                %v292 = vld [vmem:[%s280 + $0x50] sm:$0xff]
                %293 = vst [vmem:[%s281 + $0x28] sm:$0xff] %v292
                %v294 = vld [vmem:[%s280 + $0x60] sm:$0xff]
                %295 = vst [vmem:[%s281 + $0x30] sm:$0xff] %v294
                %v296 = vld [vmem:[%s280 + $0x70] sm:$0xff]
                %297 = vst [vmem:[%s281 + $0x38] sm:$0xff] %v296
                %v298 = vld [vmem:[%s280 + $0x80] sm:$0xff]
                %299 = vst [vmem:[%s281 + $0x40] sm:$0xff] %v298
                %v300 = vld [vmem:[%s280 + $0x90] sm:$0xff]
                %301 = vst [vmem:[%s281 + $0x48] sm:$0xff] %v300
                %v302 = vld [vmem:[%s280 + $0xa0] sm:$0xff]
                %303 = vst [vmem:[%s281 + $0x50] sm:$0xff] %v302
                %v304 = vld [vmem:[%s280 + $0xb0] sm:$0xff]
                %305 = vst [vmem:[%s281 + $0x58] sm:$0xff] %v304
                %v306 = vld [vmem:[%s280 + $0xc0] sm:$0xff]
                %307 = vst [vmem:[%s281 + $0x60] sm:$0xff] %v306
                %v308 = vld [vmem:[%s280 + $0xd0] sm:$0xff]
                %309 = vst [vmem:[%s281 + $0x68] sm:$0xff] %v308
              $region61: #{_lambda_.13} parent=55 // loop_footer
                %s279 = sadd.s32 1, %s275
              $region62: #{_lambda_.13} parent=55 // loop_footer_branch
                %274 = sbr.rel target = $region58
              $region63: #{_lambda_.13} parent=55 // loop_exit
                _
            $region56: #{_lambda_.13} parent=47 // pred_fallthru
              _
          $region48: #{_lambda_.13} parent=43 // pred_fallthru
            _
          %350 = vnop
        $region44: #{_lambda_.13} parent=39 // pred_fallthru
          _
        // Predicated region
        $region79: #{_lambda_.13} parent=39 // pred_check
          %p351 = pneg %p104
        $region80: #{_lambda_.13} parent=39 // pred_check_branch
          %353 = sbr.rel (%p351) target = $region82
        $region81: #{_lambda_.13} parent=39 // pred_region
          %s354 = smul.u32 2, %s16
          %p355 = scmp.lt.s32.totalorder %s354, 3
          %s356 = scalar_select %p355, %s354, 3
          %s357 = smul.addr %s356, 4
          %s358 = scalar_lea.vmem %s3, %s357
          %s359 = smul.u32 2, %s16
        $region82: #{_lambda_.13} parent=39 // pred_fallthru
          _
      $region40: #{_lambda_.13} parent=5 // pred_fallthru
        _
      %p360 = scmp.le.s32.totalorder 1, %s16
      %p361 = scmp.lt.s32.totalorder %s16, 3
      %p362 = pnand %p360, %p361
      %p363 = pneg %p362
      // Predicated region
      $region83: #{_lambda_.13} parent=5 // pred_check
        _
      $region84: #{_lambda_.13} parent=5 // pred_check_branch
        %365 = sbr.rel (%p362) target = $region86
      $region85: #{_lambda_.13} parent=5 // pred_region
        %s366 = ssub.s32 %s16, 1
        %s367 = sand.u32 %s29, 1
        %s368 = sand.u32 %s29, 1
        %s369 = smul.addr %s368, 112
        %s370 = scalar_lea.vmem [#allocation3], %s369
        // Predicated region
        $region87: #{_lambda_.13} parent=85 // pred_check
          %p371 = pneg %p42
        $region88: #{_lambda_.13} parent=85 // pred_check_branch
          %373 = sbr.rel (%p371) target = $region90
        $region89: #{_lambda_.13} parent=85 // pred_region
          _
        $region90: #{_lambda_.13} parent=85 // pred_fallthru
          _
        %s374 = sand.u32 %s29, 1
        %s375 = sand.u32 %s29, 1
        %s376 = smul.addr %s375, 112
        %s377 = scalar_lea.vmem [#allocation3], %s376
        %p378 = pneg %p42
        %p379 = pneg %p39
        %p380 = pneg %p63
        %p381 = pneg %p60
        %p382 = pneg %p84
        %p383 = pneg %p81
        %s384 = smul.u32 2, %s21
        %p385 = scmp.lt.s32.totalorder %s384, 3
        %s386 = scalar_select %p385, %s384, 3
        %s387 = smul.addr %s386, 4
        %s388 = scalar_lea.vmem %s3, %s387
        %p389 = pneg %p110
        %p390 = pneg %p107
        %p391 = pneg %p131
        %p392 = pneg %p128
        %p393 = pneg %p152
        %p394 = pneg %p149
        %p395 = pneg %p173
        %p396 = pneg %p170
        %p397 = pneg %p194
        %p398 = pneg %p191
        %p399 = pneg %p220
        %p400 = pneg %p217
        %s401 = smul.u32 2, %s21
        %p402 = scmp.lt.s32.totalorder %s401, 3
        %s403 = scalar_select %p402, %s401, 3
        %s404 = scalar_lea.vmem %s8, %s403
        %s405 = smul.u32 2, %s21
        %s406 = smul.u32 2, %s21
        %p407 = scmp.lt.s32.totalorder %s406, 3
        %s408 = scalar_select %p407, %s406, 3
        %s409 = smul.addr %s408, 4
        %s410 = scalar_lea.vmem %s3, %s409
        %s411 = smul.u32 2, %s21
        %s412 = smul.u32 2, %s21
        %p413 = scmp.lt.s32.totalorder %s412, 3
        %s414 = scalar_select %p413, %s412, 3
        %s415 = scalar_lea.vmem %s8, %s414
        %s416 = smul.u32 2, %s21
        %v418 = vld [vmem:[%s1] sm:$0x7]
        %v419 = vld [vmem:[%s370] sm:$0xff]
        %v420 = vld [vmem:[%s370 + $0x8] sm:$0xff]
        %v421 = vld [vmem:[%s370 + $0x10] sm:$0xff]
        %v422 = vld [vmem:[%s370 + $0x18] sm:$0xff]
        %v423 = vld [vmem:[%s370 + $0x20] sm:$0xff]
        %v424 = vld [vmem:[%s370 + $0x28] sm:$0xff]
        %v425 = vld [vmem:[%s370 + $0x30] sm:$0xff]
        %v426 = vld [vmem:[%s370 + $0x38] sm:$0xff]
        %v427 = vld [vmem:[%s370 + $0x40] sm:$0xff]
        %v428 = vld [vmem:[%s370 + $0x48] sm:$0xff]
        %v429 = vld [vmem:[%s370 + $0x50] sm:$0xff]
        %v430 = vld [vmem:[%s370 + $0x58] sm:$0xff]
        %v431 = vld [vmem:[%s370 + $0x60] sm:$0xff]
        %v432 = vld [vmem:[%s370 + $0x68] sm:$0x33]
        %v433 = vld [vmem:[%s2] sm:$0x3f]
        %435 = vset.pattern.permute.xlu0 0
        %436 = vperm.xlu0 %435, %v433
        %v437 = vpop.permute.xlu0 %436
        %v453 = vunpack.c.l.b16 %v419
        %v454 = vunpack.c.h.b16 %v419
        %v455 = vunpack.c.l.b16 %v420
        %v456 = vunpack.c.h.b16 %v420
        %v457 = vunpack.c.l.b16 %v421
        %v458 = vunpack.c.h.b16 %v421
        %v459 = vunpack.c.l.b16 %v422
        %v460 = vunpack.c.h.b16 %v422
        %v461 = vunpack.c.l.b16 %v423
        %v462 = vunpack.c.h.b16 %v423
        %v463 = vunpack.c.l.b16 %v424
        %v464 = vunpack.c.h.b16 %v424
        %v465 = vunpack.c.l.b16 %v425
        %v466 = vunpack.c.h.b16 %v425
        %v467 = vunpack.c.l.b16 %v426
        %v468 = vunpack.c.h.b16 %v426
        %v469 = vunpack.c.l.b16 %v427
        %v470 = vunpack.c.h.b16 %v427
        %v471 = vunpack.c.l.b16 %v428
        %v472 = vunpack.c.h.b16 %v428
        %v473 = vunpack.c.l.b16 %v429
        %v474 = vunpack.c.h.b16 %v429
        %v475 = vunpack.c.l.b16 %v430
        %v476 = vunpack.c.h.b16 %v430
        %v477 = vunpack.c.l.b16 %v431
        %v478 = vunpack.c.h.b16 %v431
        %v479 = vunpack.c.l.b16 %v432
        %v480 = vunpack.c.h.b16 %v432
        %v481 = vpack.c.b16 %v455, %v453
        %v482 = vpack.c.b16 %v456, %v454
        %v483 = vpack.c.b16 %v459, %v457
        %v484 = vpack.c.b16 %v460, %v458
        %v485 = vpack.c.b16 %v463, %v461
        %v486 = vpack.c.b16 %v464, %v462
        %v487 = vpack.c.b16 %v467, %v465
        %v488 = vpack.c.b16 %v468, %v466
        %v489 = vpack.c.b16 %v471, %v469
        %v490 = vpack.c.b16 %v472, %v470
        %v491 = vpack.c.b16 %v475, %v473
        %v492 = vpack.c.b16 %v476, %v474
        %v493 = vpack.c.b16 %v479, %v477
        %v494 = vpack.c.b16 %v480, %v478
        %vm507 = vcmask 883712
        %v509 = vsel %vm507, %v418, 0
        %vm511 = vcmask 1045504
        %v513 = vsel %vm511, %v493, 0
        %v516 = vsel %vm511, %v494, 0
        %518 = vmatprep.subr.bf16.mxu0 %v482
        %519 = vmatpush1.bf16.msra.mxu0 %v481
        %520 = vmatprep.subr.bf16.mxu0 %v484
        %521 = vmatpush1.bf16.msra.mxu0 %v483
        %522 = vmatprep.subr.bf16.mxu0 %v486
        %523 = vmatpush1.bf16.msra.mxu0 %v485
        %524 = vmatprep.subr.bf16.mxu0 %v488
        %525 = vmatpush1.bf16.msra.mxu0 %v487
        %526 = vmatprep.subr.bf16.mxu0 %v490
        %527 = vmatpush1.bf16.msra.mxu0 %v489
        %528 = vmatprep.subr.bf16.mxu0 %v492
        %529 = vmatpush1.bf16.msra.mxu0 %v491
        %530 = vmatprep.subr.bf16.mxu0 %v516
        %531 = vmatpush1.bf16.msra.mxu0 %v513
        %532 = vmatprep.subr.bf16.mxu0 0
        %533 = vmatpush1.bf16.msra.mxu0 0
        %534 = vmatprep.subr.bf16.mxu0 0
        %535 = vmatpush1.bf16.msra.mxu0 0
        %536 = vmatprep.subr.bf16.mxu0 0
        %537 = vmatpush1.bf16.msra.mxu0 0
        %538 = vmatprep.subr.bf16.mxu0 0
        %539 = vmatpush1.bf16.msra.mxu0 0
        %540 = vmatprep.subr.bf16.mxu0 0
        %541 = vmatpush1.bf16.msra.mxu0 0
        %542 = vmatprep.subr.bf16.mxu0 0
        %543 = vmatpush1.bf16.msra.mxu0 0
        %544 = vmatprep.subr.bf16.mxu0 0
        %545 = vmatpush1.bf16.msra.mxu0 0
        %546 = vmatprep.subr.bf16.mxu0 0
        %547 = vmatpush1.bf16.msra.mxu0 0
        %548 = vmatprep.subr.bf16.mxu0 0
        %549 = vmatpush1.bf16.msra.mxu0 0
        %550 = vmatprep.mubr.bf16.mxu0 0
        %551 = vmatmul.mubr.bf16.gmra.mrb[0].mxu0 %v509
        %v552 = vpop.f32.mrb[0].mxu0
        %v553 = vadd.f32 %v437, %v552
        %v554 = vpop.f32.mrb[0].mxu0
        %v555 = vadd.f32 %v437, %v554
        %v556 = vpop.f32.mrb[0].mxu0
        %v557 = vpop.f32.mrb[0].mxu0
        %558 = vdwg.mxu0
        %v559 = vld [vmem:[%s4] sm:$0x7]
        %v560 = vld [vmem:[%s410] sm:$0x77]
        %v561 = vld [vmem:[%s5] sm:$0x3f]
        %563 = vset.pattern.permute.xlu0 0
        %564 = vperm.xlu0 %563, %v561
        %v565 = vpop.permute.xlu0 %564
        %v568 = vunpack.c.l.b16 %v560
        %v569 = vunpack.c.h.b16 %v560
        %v570 = vpack.c.b16 %v568, %v568
        %v571 = vpack.c.b16 %v569, %v569
        %vm572 = vcmask 48128
        %v574 = vsel %vm572, %v559, 0
        %vm576 = vcmask 1042432
        %v578 = vsel %vm576, %v570, 0
        %v581 = vsel %vm576, %v571, 0
        %583 = vmatprep.subr.bf16.mxu0 %v581
        %584 = vmatpush1.bf16.msra.mxu0 %v578
        %585 = vmatprep.subr.bf16.mxu0 0
        %586 = vmatpush1.bf16.msra.mxu0 0
        %587 = vmatprep.subr.bf16.mxu0 0
        %588 = vmatpush1.bf16.msra.mxu0 0
        %589 = vmatprep.subr.bf16.mxu0 0
        %590 = vmatpush1.bf16.msra.mxu0 0
        %591 = vmatprep.subr.bf16.mxu0 0
        %592 = vmatpush1.bf16.msra.mxu0 0
        %593 = vmatprep.subr.bf16.mxu0 0
        %594 = vmatpush1.bf16.msra.mxu0 0
        %595 = vmatprep.subr.bf16.mxu0 0
        %596 = vmatpush1.bf16.msra.mxu0 0
        %597 = vmatprep.subr.bf16.mxu0 0
        %598 = vmatpush1.bf16.msra.mxu0 0
        %599 = vmatprep.subr.bf16.mxu0 0
        %600 = vmatpush1.bf16.msra.mxu0 0
        %601 = vmatprep.subr.bf16.mxu0 0
        %602 = vmatpush1.bf16.msra.mxu0 0
        %603 = vmatprep.subr.bf16.mxu0 0
        %604 = vmatpush1.bf16.msra.mxu0 0
        %605 = vmatprep.subr.bf16.mxu0 0
        %606 = vmatpush1.bf16.msra.mxu0 0
        %607 = vmatprep.subr.bf16.mxu0 0
        %608 = vmatpush1.bf16.msra.mxu0 0
        %609 = vmatprep.subr.bf16.mxu0 0
        %610 = vmatpush1.bf16.msra.mxu0 0
        %611 = vmatprep.subr.bf16.mxu0 0
        %612 = vmatpush1.bf16.msra.mxu0 0
        %613 = vmatprep.subr.bf16.mxu0 0
        %614 = vmatpush1.bf16.msra.mxu0 0
        %615 = vmatprep.mubr.bf16.mxu0 0
        %616 = vmatmul.mubr.bf16.gmra.mrb[0].mxu0 %v574
        %v617 = vpop.f32.mrb[0].mxu0
        %v618 = vadd.f32 %v565, %v617
        %v619 = vpop.f32.mrb[0].mxu0
        %v620 = vadd.f32 %v565, %v619
        %v621 = vpop.f32.mrb[0].mxu0
        %v622 = vpop.f32.mrb[0].mxu0
        %623 = vdwg.mxu0
        %v624 = vmul.f32 %v553, %v618
        %v625 = vmul.f32 %v555, %v620
        %v626 = vld [vmem:[%s6] sm:$0x1]
        %v627 = vunpack.c.l.bf16 %v626
        %v628 = vld [vmem:[#allocation2] sm:$0x1]
        %630 = vset.pattern.permute.xlu0 0
        %631 = vperm.xlu0 %630, %v628
        %v632 = vpop.permute.xlu0 %631
        %v634 = vlaneseq
        %v635 = vshrl.u32 %v634, 7
        %v636 = vsub.s32 0, %v635
        %v637 = vrot.slane %v632, %v636
        %v639 = vsel %vm572, %v627, 0
        %v642 = vsel %vm511, %v624, 0
        %v645 = vsel %vm511, %v625, 0
        %647 = vmatprep.subr.mxu0 %v645
        %648 = vmatpush1.msra.mxu0 %v642
        %649 = vmatprep.subr.mxu0 0.0
        %650 = vmatpush1.msra.mxu0 0.0
        %651 = vmatprep.subr.mxu0 0.0
        %652 = vmatpush1.msra.mxu0 0.0
        %653 = vmatprep.subr.mxu0 0.0
        %654 = vmatpush1.msra.mxu0 0.0
        %655 = vmatprep.subr.mxu0 0.0
        %656 = vmatpush1.msra.mxu0 0.0
        %657 = vmatprep.subr.mxu0 0.0
        %658 = vmatpush1.msra.mxu0 0.0
        %659 = vmatprep.subr.mxu0 0.0
        %660 = vmatpush1.msra.mxu0 0.0
        %661 = vmatprep.subr.mxu0 0.0
        %662 = vmatpush1.msra.mxu0 0.0
        %663 = vmatprep.subr.mxu0 0.0
        %664 = vmatpush1.msra.mxu0 0.0
        %665 = vmatprep.subr.mxu0 0.0
        %666 = vmatpush1.msra.mxu0 0.0
        %667 = vmatprep.subr.mxu0 0.0
        %668 = vmatpush1.msra.mxu0 0.0
        %669 = vmatprep.subr.mxu0 0.0
        %670 = vmatpush1.msra.mxu0 0.0
        %671 = vmatprep.subr.mxu0 0.0
        %672 = vmatpush1.msra.mxu0 0.0
        %673 = vmatprep.subr.mxu0 0.0
        %674 = vmatpush1.msra.mxu0 0.0
        %675 = vmatprep.subr.mxu0 0.0
        %676 = vmatpush1.msra.mxu0 0.0
        %677 = vmatprep.subr.mxu0 0.0
        %678 = vmatpush1.msra.mxu0 0.0
        %679 = vmatprep.subr.mxu0 0.0
        %680 = vmatpush1.msra.mxu0 0.0
        %681 = vmatprep.subr.mxu0 0.0
        %682 = vmatpush1.msra.mxu0 0.0
        %683 = vmatprep.subr.mxu0 0.0
        %684 = vmatpush1.msra.mxu0 0.0
        %685 = vmatprep.subr.mxu0 0.0
        %686 = vmatpush1.msra.mxu0 0.0
        %687 = vmatprep.subr.mxu0 0.0
        %688 = vmatpush1.msra.mxu0 0.0
        %689 = vmatprep.subr.mxu0 0.0
        %690 = vmatpush1.msra.mxu0 0.0
        %691 = vmatprep.subr.mxu0 0.0
        %692 = vmatpush1.msra.mxu0 0.0
        %693 = vmatprep.subr.mxu0 0.0
        %694 = vmatpush1.msra.mxu0 0.0
        %695 = vmatprep.subr.mxu0 0.0
        %696 = vmatpush1.msra.mxu0 0.0
        %697 = vmatprep.subr.mxu0 0.0
        %698 = vmatpush1.msra.mxu0 0.0
        %699 = vmatprep.subr.mxu0 0.0
        %700 = vmatpush1.msra.mxu0 0.0
        %701 = vmatprep.subr.mxu0 0.0
        %702 = vmatpush1.msra.mxu0 0.0
        %703 = vmatprep.subr.mxu0 0.0
        %704 = vmatpush1.msra.mxu0 0.0
        %705 = vmatprep.subr.mxu0 0.0
        %706 = vmatpush1.msra.mxu0 0.0
        %707 = vmatprep.subr.mxu0 0.0
        %708 = vmatpush1.msra.mxu0 0.0
        %709 = vmatprep.subr.mxu0 0.0
        %710 = vmatpush1.msra.mxu0 0.0
        %711 = vmatprep.mubr.f32.mxu0 0.0
        %712 = vmatmul.mubr.f32.gmra.mrb[0].mxu0 %v639
        %v713 = vpop.f32.mrb[0].mxu0
        %v714 = vadd.f32 %v637, %v713
        %v715 = vpop.f32.mrb[0].mxu0
        %v716 = vadd.f32 %v637, %v715
        %717 = vdwg.mxu0
        %v720 = vcombine.low %v714, %v716
        %v722 = vunpack.c.l.s4 1966171168
        %v723 = vunpack.c.0.s8 %v722
        %v724 = vlaneseq
        %v725 = vshrl.u32 %v724, 7
        %v726 = vsub.s32 %v723, %v725
        %v727 = vrot.slane %v720, %v726
        %v729 = vunpack.c.l.s4 1966171168
        %v730 = vunpack.c.0.s8 %v729
        %v731 = vlaneseq
        %v732 = vshrl.u32 %v731, 7
        %v733 = vsub.s32 %v730, %v732
        %v734 = vrot.slane %v727, %v733
        %v736 = vlaneseq
        %vm737 = vcmp.ge.s32.totalorder %v736, 0
        %vm738 = vcmp.lt.s32.totalorder %v736, 256
        %vm739 = vmand %vm737, %vm738
        %740 = vst.msk [vmem:[%s415] sm:$0x3] %vm739, %v734
        %s741 = smul.u32 2, %s21
        %p742 = scmp.lt.s32.totalorder %s741, 3
        %s743 = scalar_select %p742, %s741, 3
        %s744 = scalar_lea.vmem %s8, %s743
        // Predicated region
        $region91: #{_lambda_.13} parent=85 // pred_check
          %p745 = pneg %p217
        $region92: #{_lambda_.13} parent=85 // pred_check_branch
          %747 = sbr.rel (%p745) target = $region94
        $region93: #{_lambda_.13} parent=85 // pred_region
          %s748 = smul.u32 2, %s21
        $region94: #{_lambda_.13} parent=85 // pred_fallthru
          _
      $region86: #{_lambda_.13} parent=5 // pred_fallthru
        _
      %p749 = scmp.le.s32.totalorder 2, %s16
      // Predicated region
      $region95: #{_lambda_.13} parent=5 // pred_check
        %p750 = pneg %p749
      $region96: #{_lambda_.13} parent=5 // pred_check_branch
        %752 = sbr.rel (%p750) target = $region98
      $region97: #{_lambda_.13} parent=5 // pred_region
        %s753 = ssub.s32 %s16, 2
        // Predicated region
        $region99: #{_lambda_.13} parent=97 // pred_check
          %p754 = pneg %p223
        $region100: #{_lambda_.13} parent=97 // pred_check_branch
          %756 = sbr.rel (%p754) target = $region102
        $region101: #{_lambda_.13} parent=97 // pred_region
          %s757 = smul.u32 2, %s22
          %p758 = scmp.lt.s32.totalorder %s757, 3
          %s759 = scalar_select %p758, %s757, 3
          %s760 = scalar_lea.vmem %s8, %s759
        $region102: #{_lambda_.13} parent=97 // pred_fallthru
          _
      $region98: #{_lambda_.13} parent=5 // pred_fallthru
        _
    $region6: #{_lambda_.13} parent=1 // loop_footer
      %s20 = sadd.s32 1, %s16
    $region7: #{_lambda_.13} parent=1 // loop_footer_branch
      %15 = sbr.rel target = $region3
    $region8: #{_lambda_.13} parent=1 // loop_exit
      _

</llo_original>
